<compile_context>
chip_gen: v7x
topology: tpu7x:2x2x1
jax: 0.10.0
libtpu: 0.0.40
codegen_flags: <defaults>
</compile_context>

<pallas_src>
import functools

import jax
import jax.numpy as jnp
from jax.experimental import pallas as pl
from jax.experimental.pallas import tpu as pltpu

LANES = 128          # TPU lane width; output (N) dims are padded to this.
CONV_TILE_M = 64     # 4 pool phases x 64 = 256 LHS rows per MXU pass.
MLP_TILE_M = 256     # batch-row tile for the fused MLP kernel.

_COMPILER_PARAMS = pltpu.CompilerParams(
    dimension_semantics=("parallel",),      # M axis: shard across v7x's 2 TCs
    vmem_limit_bytes=32 * 1024 * 1024,      # well under v7x's 64 MiB VMEM
)


def _round_up(x, m):
    return (x + m - 1) // m * m


def _tile_and_pad(m, max_tile):
    """Pick an M tile (multiple of 16, <= max_tile) and the padded M."""
    tile = min(max_tile, _round_up(m, 16))
    return tile, _round_up(m, tile)


def _pad_rows(a, axis, new_size):
    if new_size == a.shape[axis]:
        return a
    pad = [(0, 0)] * a.ndim
    pad[axis] = (0, new_size - a.shape[axis])
    return jnp.pad(a, pad)


# ----------------------------------------------------------------------------
# Pallas kernels
# ----------------------------------------------------------------------------
def _conv_pool_kernel(p_ref, w_ref, b_ref, o_ref):
    """Fused conv(as matmul) + bias + ReLU + 2x2/stride-2 maxpool.

    p: (4, tile_m, K) bf16  im2col patches, one slab per 2x2 pool phase
    w: (K, 128)       bf16  packed conv weight (output channels in lanes)
    b: (1, 128)       f32   packed bias
    o: (tile_m, 128)  bf16  pooled, ReLU'd activations (channels in lanes)
    """
    nph, tm, k = p_ref.shape
    # One MXU pass for all four pool phases: collapse phases into the row dim.
    lhs = p_ref[...].reshape(nph * tm, k)
    y = jnp.dot(lhs, w_ref[...], preferred_element_type=jnp.float32)
    # 2x2 maxpool = elementwise max across the four tm-row phase groups.
    y = jnp.maximum(jnp.maximum(y[0 * tm:1 * tm], y[1 * tm:2 * tm]),
                    jnp.maximum(y[2 * tm:3 * tm], y[3 * tm:4 * tm]))
    # Bias is phase-invariant and ReLU commutes with max -> add/clamp once (f32).
    o_ref[...] = jnp.maximum(y + b_ref[...], 0.0).astype(o_ref.dtype)


def conv_pool(patches, w, b, *, tile_m):
    _, m, k = patches.shape
    n = w.shape[1]
    return pl.pallas_call(
        _conv_pool_kernel,
        out_shape=jax.ShapeDtypeStruct((m, n), jnp.bfloat16),
        grid=(m // tile_m,),
        in_specs=[
            pl.BlockSpec((4, tile_m, k), lambda i: (0, i, 0)),
            pl.BlockSpec((k, n), lambda i: (0, 0)),   # weight: VMEM-resident
            pl.BlockSpec((1, n), lambda i: (0, 0)),   # bias:   VMEM-resident
        ],
        out_specs=pl.BlockSpec((tile_m, n), lambda i: (i, 0)),
        compiler_params=_COMPILER_PARAMS,
    )(patches, w, b)


def _mlp_kernel(x_ref, w1_ref, b1_ref, w2_ref, b2_ref, w3_ref, b3_ref, o_ref):
    """fc1+ReLU -> fc2+ReLU -> fc3 fused; hidden activations never leave VMEM."""
    h = jnp.dot(x_ref[...], w1_ref[...], preferred_element_type=jnp.float32)
    h = jnp.maximum(h + b1_ref[...], 0.0).astype(x_ref.dtype)     # bf16 for MXU
    h = jnp.dot(h, w2_ref[...], preferred_element_type=jnp.float32)
    h = jnp.maximum(h + b2_ref[...], 0.0).astype(x_ref.dtype)
    h = jnp.dot(h, w3_ref[...], preferred_element_type=jnp.float32)
    o_ref[...] = (h + b3_ref[...]).astype(o_ref.dtype)


def mlp(x, w1, b1, w2, b2, w3, b3, *, tile_m):
    m, _ = x.shape
    n = w3.shape[1]
    const = lambda i: (0, 0)
    return pl.pallas_call(
        _mlp_kernel,
        out_shape=jax.ShapeDtypeStruct((m, n), jnp.float32),
        grid=(m // tile_m,),
        in_specs=[
            pl.BlockSpec((tile_m, x.shape[1]), lambda i: (i, 0)),
            pl.BlockSpec(w1.shape, const), pl.BlockSpec(b1.shape, const),
            pl.BlockSpec(w2.shape, const), pl.BlockSpec(b2.shape, const),
            pl.BlockSpec(w3.shape, const), pl.BlockSpec(b3.shape, const),
        ],
        out_specs=pl.BlockSpec((tile_m, n), lambda i: (i, 0)),
        compiler_params=_COMPILER_PARAMS,
    )(x, w1, b1, w2, b2, w3, b3)


# ----------------------------------------------------------------------------
# XLA glue: pool-phase im2col (layout plumbing only; no zero K-padding in HBM)
# ----------------------------------------------------------------------------
def pool_phase_patches(x, kh, kw):
    """x: (B, H, W, C) NHWC (already spatially padded, bf16).

    Returns (4, B*(Ho//2)*(Wo//2), kh*kw*C): im2col patches split into the four
    2x2 pool phases, built directly from strided slices (no full im2col
    intermediate).  Patch-element order is (i, j, c); row order is (b, yo, xo).
    """
    B, H, W, C = x.shape
    Ho, Wo = H - kh + 1, W - kw + 1
    assert Ho % 2 == 0 and Wo % 2 == 0, "conv output must be even for 2x2 pool"
    Hq, Wq = Ho // 2, Wo // 2
    phases = []
    for py in (0, 1):
        for px in (0, 1):
            cols = [x[:, py + i: py + i + 2 * Hq: 2,
                      px + j: px + j + 2 * Wq: 2, :]
                    for i in range(kh) for j in range(kw)]
            ph = jnp.concatenate(cols, axis=-1)          # (B, Hq, Wq, kh*kw*C)
            phases.append(ph.reshape(B * Hq * Wq, kh * kw * C))
    return jnp.stack(phases, axis=0)                     # (4, M, K)


# ----------------------------------------------------------------------------
# Parameter packing (torch layout -> lane-dense matmul operands, done once)
# ----------------------------------------------------------------------------
def pack_conv(w, b, *, cin_pad):
    """(Cout,Cin,kh,kw)+(Cout,) -> bf16 (kh*kw*cin_pad, 128), f32 (1, 128)."""
    cout, cin, kh, kw = w.shape
    wt = jnp.transpose(w, (2, 3, 1, 0))                  # (kh, kw, Cin, Cout)
    wt = jnp.pad(wt, ((0, 0), (0, 0), (0, cin_pad - cin), (0, LANES - cout)))
    wm = wt.reshape(kh * kw * cin_pad, LANES).astype(jnp.bfloat16)
    bm = jnp.pad(b.reshape(1, cout), ((0, 0), (0, LANES - cout))).astype(jnp.float32)
    return wm, bm


def pack_fc1(w, b, *, c_valid, n_pos, c_pad):
    """torch fc1 (120, c_valid*n_pos) with input index c*n_pos + pos.

    Folds the torch NCHW flatten order into the weight rows so the activation
    can be fed position-major / channel-minor: packed row = pos*c_pad + c.
    """
    nout, nin = w.shape
    assert nin == c_valid * n_pos
    wt = w.T.reshape(c_valid, n_pos, nout)               # (c, pos, n)
    wt = jnp.transpose(wt, (1, 0, 2))                    # (pos, c, n)
    wt = jnp.pad(wt, ((0, 0), (0, c_pad - c_valid), (0, LANES - nout)))
    wm = wt.reshape(n_pos * c_pad, LANES).astype(jnp.bfloat16)
    bm = jnp.pad(b.reshape(1, nout), ((0, 0), (0, LANES - nout))).astype(jnp.float32)
    return wm, bm


def pack_fc(w, b):
    """torch linear (out, in) -> bf16 (128, 128) + f32 (1, 128).

    K is padded to 128 because the fused-MLP hidden activation carries 128
    lanes (the extra lanes are exactly zero, as are the extra weight rows).
    """
    nout, nin = w.shape
    wm = jnp.pad(w.T, ((0, LANES - nin), (0, LANES - nout))).astype(jnp.bfloat16)
    bm = jnp.pad(b.reshape(1, nout), ((0, 0), (0, LANES - nout))).astype(jnp.float32)
    return wm, bm


def init_lenet_params(key, num_channels, num_classes=10):
    """Parameters in the original torch layout."""
    ks = jax.random.split(key, 10)
    s = 0.05
    return {
        "w1": s * jax.random.normal(ks[0], (6, num_channels, 5, 5), jnp.float32),
        "b1": s * jax.random.normal(ks[1], (6,), jnp.float32),
        "w2": s * jax.random.normal(ks[2], (16, 6, 5, 5), jnp.float32),
        "b2": s * jax.random.normal(ks[3], (16,), jnp.float32),
        "wf1": s * jax.random.normal(ks[4], (120, 16 * 5 * 5), jnp.float32),
        "bf1": s * jax.random.normal(ks[5], (120,), jnp.float32),
        "wf2": s * jax.random.normal(ks[6], (84, 120), jnp.float32),
        "bf2": s * jax.random.normal(ks[7], (84,), jnp.float32),
        "wf3": s * jax.random.normal(ks[8], (num_classes, 84), jnp.float32),
        "bf3": s * jax.random.normal(ks[9], (num_classes,), jnp.float32),
    }


def pack_lenet_params(p):
    w1, b1 = pack_conv(p["w1"], p["b1"], cin_pad=p["w1"].shape[1])   # K = 25*Cin
    w2, b2 = pack_conv(p["w2"], p["b2"], cin_pad=8)                  # K = 200
    wf1, bf1 = pack_fc1(p["wf1"], p["bf1"], c_valid=16, n_pos=25, c_pad=16)
    wf2, bf2 = pack_fc(p["wf2"], p["bf2"])
    wf3, bf3 = pack_fc(p["wf3"], p["bf3"])
    return dict(w1=w1, b1=b1, w2=w2, b2=b2, wf1=wf1, bf1=bf1,
                wf2=wf2, bf2=bf2, wf3=wf3, bf3=bf3)


# ----------------------------------------------------------------------------
# LeNet forward
# ----------------------------------------------------------------------------
def lenet_forward(packed, x_nchw, *, num_channels, num_classes=10):
    B = x_nchw.shape[0]
    x = jnp.transpose(x_nchw, (0, 2, 3, 1)).astype(jnp.bfloat16)   # NHWC, bf16
    if num_channels == 1:
        x = jnp.pad(x, ((0, 0), (2, 2), (2, 2), (0, 0)))

    # Stage 1: conv1(5x5) + bias + ReLU + maxpool2x2 -- one Pallas kernel.
    p1 = pool_phase_patches(x, 5, 5)                     # (4, M1, 25*Cin) bf16
    H1, W1 = (x.shape[1] - 4) // 2, (x.shape[2] - 4) // 2
    M1 = B * H1 * W1
    t1, M1p = _tile_and_pad(M1, CONV_TILE_M)
    p1 = _pad_rows(p1, 1, M1p)
    h1 = conv_pool(p1, packed["w1"], packed["b1"], tile_m=t1)       # (M1p, 128)
    h1 = h1[:M1].reshape(B, H1, W1, LANES)[..., :8]      # keep 8 lanes (6 valid)

    # Stage 2: conv2(5x5) + bias + ReLU + maxpool2x2 -- one Pallas kernel.
    p2 = pool_phase_patches(h1, 5, 5)                    # (4, M2, 200) bf16
    H2, W2 = (H1 - 4) // 2, (W1 - 4) // 2
    M2 = B * H2 * W2
    t2, M2p = _tile_and_pad(M2, CONV_TILE_M)
    p2 = _pad_rows(p2, 1, M2p)
    h2 = conv_pool(p2, packed["w2"], packed["b2"], tile_m=t2)       # (M2p, 128)

    # Classifier: fc1+ReLU+fc2+ReLU+fc3 fused into one Pallas kernel.  The
    # torch NCHW flatten order is folded into the packed fc1 weight rows, so
    # the activation is fed position-major / channel-minor with K = 400.
    xf = h2[:M2].reshape(B, H2, W2, LANES)[..., :16].reshape(B, H2 * W2 * 16)
    tb, Bp = _tile_and_pad(B, MLP_TILE_M)
    xf = _pad_rows(xf, 0, Bp)
    out = mlp(xf, packed["wf1"], packed["bf1"], packed["wf2"], packed["bf2"],
              packed["wf3"], packed["bf3"], tile_m=tb)              # (Bp, 128)
    return out[:B, :num_classes]


# ----------------------------------------------------------------------------
# Pure-JAX reference (operands rounded to bf16 at the same points as the kernel)
# ----------------------------------------------------------------------------
def lenet_reference(params, x_nchw, *, num_channels, num_classes=10):
    bf = lambda a: a.astype(jnp.bfloat16).astype(jnp.float32)
    B = x_nchw.shape[0]
    x = bf(jnp.transpose(x_nchw, (0, 2, 3, 1)))
    if num_channels == 1:
        x = jnp.pad(x, ((0, 0), (2, 2), (2, 2), (0, 0)))

    def conv_relu(h, w, b):
        wt = bf(jnp.transpose(w, (2, 3, 1, 0)))          # HWIO
        y = jax.lax.conv_general_dilated(
            h, wt, window_strides=(1, 1), padding="VALID",
            dimension_numbers=("NHWC", "HWIO", "NHWC"),
            precision=jax.lax.Precision.HIGHEST)
        return jnp.maximum(y + b.reshape(1, 1, 1, -1), 0.0)

    def pool(y):
        b_, h_, w_, c_ = y.shape
        return jnp.max(y.reshape(b_, h_ // 2, 2, w_ // 2, 2, c_), axis=(2, 4))

    h = bf(pool(conv_relu(x, params["w1"], params["b1"])))
    h = bf(pool(conv_relu(h, params["w2"], params["b2"])))
    h = jnp.transpose(h, (0, 3, 1, 2)).reshape(B, -1)    # torch NCHW flatten
    mm = lambda a, w: jnp.dot(a, bf(w.T), precision=jax.lax.Precision.HIGHEST)
    h = bf(jnp.maximum(mm(h, params["wf1"]) + params["bf1"], 0.0))
    h = bf(jnp.maximum(mm(h, params["wf2"]) + params["bf2"], 0.0))
    return mm(h, params["wf3"]) + params["bf3"]


if __name__ == "__main__":
    num_channels = 1   # padding=2 branch; 28x28 input yields the 16*5*5 flatten
    num_classes = 10
    batch = 2

    key = jax.random.PRNGKey(0)
    k_param, k_x = jax.random.split(key)
    params = init_lenet_params(k_param, num_channels, num_classes)
    packed = pack_lenet_params(params)
    x = jax.random.normal(k_x, (batch, num_channels, 28, 28), jnp.float32)

    fwd = jax.jit(functools.partial(lenet_forward,
                                    num_channels=num_channels,
                                    num_classes=num_classes))
    out = jax.block_until_ready(fwd(packed, x))

    assert out.shape == (batch, num_classes), out.shape
    assert out.dtype == jnp.float32
    assert bool(jnp.all(jnp.isfinite(out)))

    ref = lenet_reference(params, x, num_channels=num_channels,
                          num_classes=num_classes)
    assert bool(jnp.allclose(out, ref, atol=2e-3, rtol=2e-2)), (out, ref)

    print("KERNEL_OK")
</pallas_src>

<mosaic_0001>
module attributes {stable_mosaic.version = 11 : i64} {
  func.func @_conv_pool_kernel(%arg0: i32, %arg1: memref<4x64x25xbf16, #tpu.memory_space<vmem>>, %arg2: memref<25x128xbf16, #tpu.memory_space<vmem>>, %arg3: memref<1x128xf32, #tpu.memory_space<vmem>>, %arg4: memref<64x128xbf16, #tpu.memory_space<vmem>>) attributes {dimension_semantics = [#tpu.dimension_semantics<parallel>], iteration_bounds = array<i64: 7>, scalar_prefetch = 0 : i64, scratch_operands = 0 : i64, tpu.core_type = #tpu.core_type<tc>, window_params = [{transform_indices = @transform_0, window_bounds = array<i64: 4, 64, 25>}, {pipeline_mode = #tpu.pipeline_mode<synchronous>, transform_indices = @transform_1, window_bounds = array<i64: 25, 128>}, {pipeline_mode = #tpu.pipeline_mode<synchronous>, transform_indices = @transform_2, window_bounds = array<i64: 1, 128>}, {transform_indices = @transform_3, window_bounds = array<i64: 64, 128>}]} {
    %c0 = arith.constant 0 : index
    %c0_0 = arith.constant 0 : index
    %c0_1 = arith.constant 0 : index
    %0 = vector.load %arg1[%c0, %c0_0, %c0_1] : memref<4x64x25xbf16, #tpu.memory_space<vmem>>, vector<4x64x25xbf16>
    %1 = vector.shape_cast %0 : vector<4x64x25xbf16> to vector<256x25xbf16>
    %c0_2 = arith.constant 0 : index
    %c0_3 = arith.constant 0 : index
    %2 = vector.load %arg2[%c0_2, %c0_3] : memref<25x128xbf16, #tpu.memory_space<vmem>>, vector<25x128xbf16>
    %cst = arith.constant dense<0.000000e+00> : vector<256x128xf32>
    %3 = tpu.matmul %1, %2, %cst {dimension_numbers = #tpu.dot_dimension_numbers<[1], [0], [0], [1], [0, 0, 1, 1], [], []>} : vector<256x25xbf16>, vector<25x128xbf16>, vector<256x128xf32> -> vector<256x128xf32>
    %4 = vector.extract_strided_slice %3 {offsets = [0, 0], sizes = [64, 128], strides = [1, 1]} : vector<256x128xf32> to vector<64x128xf32>
    %5 = vector.extract_strided_slice %3 {offsets = [64, 0], sizes = [64, 128], strides = [1, 1]} : vector<256x128xf32> to vector<64x128xf32>
    %6 = arith.maximumf %4, %5 : vector<64x128xf32>
    %7 = vector.extract_strided_slice %3 {offsets = [128, 0], sizes = [64, 128], strides = [1, 1]} : vector<256x128xf32> to vector<64x128xf32>
    %8 = vector.extract_strided_slice %3 {offsets = [192, 0], sizes = [64, 128], strides = [1, 1]} : vector<256x128xf32> to vector<64x128xf32>
    %9 = arith.maximumf %7, %8 : vector<64x128xf32>
    %10 = arith.maximumf %6, %9 : vector<64x128xf32>
    %c0_4 = arith.constant 0 : index
    %c0_5 = arith.constant 0 : index
    %11 = vector.load %arg3[%c0_4, %c0_5] : memref<1x128xf32, #tpu.memory_space<vmem>>, vector<1x128xf32>
    %12 = vector.broadcast %11 : vector<1x128xf32> to vector<64x128xf32>
    %13 = arith.addf %10, %12 : vector<64x128xf32>
    %cst_6 = arith.constant 0.000000e+00 : f32
    %14 = vector.broadcast %cst_6 : f32 to vector<64x128xf32>
    %15 = arith.maximumf %13, %14 : vector<64x128xf32>
    %16 = arith.truncf %15 : vector<64x128xf32> to vector<64x128xbf16>
    %c0_7 = arith.constant 0 : index
    %c0_8 = arith.constant 0 : index
    %17 = vector.load %arg4[%c0_7, %c0_8] : memref<64x128xbf16, #tpu.memory_space<vmem>>, vector<64x128xbf16>
    tpu.vector_store %arg4[%c0_7, %c0_8], %16 {strides = array<i32>} : memref<64x128xbf16, #tpu.memory_space<vmem>>, vector<64x128xbf16>,
    return
  }
  func.func @transform_0(%arg0: i32) -> (i32, i32, i32) {
    %c0_i32 = arith.constant 0 : i32
    %c0_i32_0 = arith.constant 0 : i32
    %c0_i32_1 = arith.constant 0 : i32
    return %c0_i32, %arg0, %c0_i32_0 : i32, i32, i32
  }
  func.func @transform_1(%arg0: i32) -> (i32, i32) {
    %c0_i32 = arith.constant 0 : i32
    %c0_i32_0 = arith.constant 0 : i32
    %c0_i32_1 = arith.constant 0 : i32
    return %c0_i32, %c0_i32_0 : i32, i32
  }
  func.func @transform_2(%arg0: i32) -> (i32, i32) {
    %c0_i32 = arith.constant 0 : i32
    %c0_i32_0 = arith.constant 0 : i32
    %c0_i32_1 = arith.constant 0 : i32
    return %c0_i32, %c0_i32_0 : i32, i32
  }
  func.func @transform_3(%arg0: i32) -> (i32, i32) {
    %c0_i32 = arith.constant 0 : i32
    %c0_i32_0 = arith.constant 0 : i32
    return %arg0, %c0_i32 : i32, i32
  }
}

module attributes {stable_mosaic.version = 11 : i64} {
  func.func @_conv_pool_kernel(%arg0: i32, %arg1: memref<4x64x200xbf16, #tpu.memory_space<vmem>>, %arg2: memref<200x128xbf16, #tpu.memory_space<vmem>>, %arg3: memref<1x128xf32, #tpu.memory_space<vmem>>, %arg4: memref<64x128xbf16, #tpu.memory_space<vmem>>) attributes {dimension_semantics = [#tpu.dimension_semantics<parallel>], iteration_bounds = array<i64: 1>, scalar_prefetch = 0 : i64, scratch_operands = 0 : i64, tpu.core_type = #tpu.core_type<tc>, window_params = [{transform_indices = @transform_0, window_bounds = array<i64: 4, 64, 200>}, {pipeline_mode = #tpu.pipeline_mode<synchronous>, transform_indices = @transform_1, window_bounds = array<i64: 200, 128>}, {pipeline_mode = #tpu.pipeline_mode<synchronous>, transform_indices = @transform_2, window_bounds = array<i64: 1, 128>}, {transform_indices = @transform_3, window_bounds = array<i64: 64, 128>}]} {
    %c0 = arith.constant 0 : index
    %c0_0 = arith.constant 0 : index
    %c0_1 = arith.constant 0 : index
    %0 = vector.load %arg1[%c0, %c0_0, %c0_1] : memref<4x64x200xbf16, #tpu.memory_space<vmem>>, vector<4x64x200xbf16>
    %1 = vector.shape_cast %0 : vector<4x64x200xbf16> to vector<256x200xbf16>
    %c0_2 = arith.constant 0 : index
    %c0_3 = arith.constant 0 : index
    %2 = vector.load %arg2[%c0_2, %c0_3] : memref<200x128xbf16, #tpu.memory_space<vmem>>, vector<200x128xbf16>
    %cst = arith.constant dense<0.000000e+00> : vector<256x128xf32>
    %3 = tpu.matmul %1, %2, %cst {dimension_numbers = #tpu.dot_dimension_numbers<[1], [0], [0], [1], [0, 0, 1, 1], [], []>} : vector<256x200xbf16>, vector<200x128xbf16>, vector<256x128xf32> -> vector<256x128xf32>
    %4 = vector.extract_strided_slice %3 {offsets = [0, 0], sizes = [64, 128], strides = [1, 1]} : vector<256x128xf32> to vector<64x128xf32>
    %5 = vector.extract_strided_slice %3 {offsets = [64, 0], sizes = [64, 128], strides = [1, 1]} : vector<256x128xf32> to vector<64x128xf32>
    %6 = arith.maximumf %4, %5 : vector<64x128xf32>
    %7 = vector.extract_strided_slice %3 {offsets = [128, 0], sizes = [64, 128], strides = [1, 1]} : vector<256x128xf32> to vector<64x128xf32>
    %8 = vector.extract_strided_slice %3 {offsets = [192, 0], sizes = [64, 128], strides = [1, 1]} : vector<256x128xf32> to vector<64x128xf32>
    %9 = arith.maximumf %7, %8 : vector<64x128xf32>
    %10 = arith.maximumf %6, %9 : vector<64x128xf32>
    %c0_4 = arith.constant 0 : index
    %c0_5 = arith.constant 0 : index
    %11 = vector.load %arg3[%c0_4, %c0_5] : memref<1x128xf32, #tpu.memory_space<vmem>>, vector<1x128xf32>
    %12 = vector.broadcast %11 : vector<1x128xf32> to vector<64x128xf32>
    %13 = arith.addf %10, %12 : vector<64x128xf32>
    %cst_6 = arith.constant 0.000000e+00 : f32
    %14 = vector.broadcast %cst_6 : f32 to vector<64x128xf32>
    %15 = arith.maximumf %13, %14 : vector<64x128xf32>
    %16 = arith.truncf %15 : vector<64x128xf32> to vector<64x128xbf16>
    %c0_7 = arith.constant 0 : index
    %c0_8 = arith.constant 0 : index
    %17 = vector.load %arg4[%c0_7, %c0_8] : memref<64x128xbf16, #tpu.memory_space<vmem>>, vector<64x128xbf16>
    tpu.vector_store %arg4[%c0_7, %c0_8], %16 {strides = array<i32>} : memref<64x128xbf16, #tpu.memory_space<vmem>>, vector<64x128xbf16>,
    return
  }
  func.func @transform_0(%arg0: i32) -> (i32, i32, i32) {
    %c0_i32 = arith.constant 0 : i32
    %c0_i32_0 = arith.constant 0 : i32
    %c0_i32_1 = arith.constant 0 : i32
    return %c0_i32, %arg0, %c0_i32_0 : i32, i32, i32
  }
  func.func @transform_1(%arg0: i32) -> (i32, i32) {
    %c0_i32 = arith.constant 0 : i32
    %c0_i32_0 = arith.constant 0 : i32
    %c0_i32_1 = arith.constant 0 : i32
    return %c0_i32, %c0_i32_0 : i32, i32
  }
  func.func @transform_2(%arg0: i32) -> (i32, i32) {
    %c0_i32 = arith.constant 0 : i32
    %c0_i32_0 = arith.constant 0 : i32
    %c0_i32_1 = arith.constant 0 : i32
    return %c0_i32, %c0_i32_0 : i32, i32
  }
  func.func @transform_3(%arg0: i32) -> (i32, i32) {
    %c0_i32 = arith.constant 0 : i32
    %c0_i32_0 = arith.constant 0 : i32
    return %arg0, %c0_i32 : i32, i32
  }
}

module attributes {stable_mosaic.version = 11 : i64} {
  func.func @_mlp_kernel(%arg0: i32, %arg1: memref<16x400xbf16, #tpu.memory_space<vmem>>, %arg2: memref<400x128xbf16, #tpu.memory_space<vmem>>, %arg3: memref<1x128xf32, #tpu.memory_space<vmem>>, %arg4: memref<128x128xbf16, #tpu.memory_space<vmem>>, %arg5: memref<1x128xf32, #tpu.memory_space<vmem>>, %arg6: memref<128x128xbf16, #tpu.memory_space<vmem>>, %arg7: memref<1x128xf32, #tpu.memory_space<vmem>>, %arg8: memref<16x128xf32, #tpu.memory_space<vmem>>) attributes {dimension_semantics = [#tpu.dimension_semantics<parallel>], iteration_bounds = array<i64: 1>, scalar_prefetch = 0 : i64, scratch_operands = 0 : i64, tpu.core_type = #tpu.core_type<tc>, window_params = [{transform_indices = @transform_0, window_bounds = array<i64: 16, 400>}, {pipeline_mode = #tpu.pipeline_mode<synchronous>, transform_indices = @transform_1, window_bounds = array<i64: 400, 128>}, {pipeline_mode = #tpu.pipeline_mode<synchronous>, transform_indices = @transform_2, window_bounds = array<i64: 1, 128>}, {pipeline_mode = #tpu.pipeline_mode<synchronous>, transform_indices = @transform_3, window_bounds = array<i64: 128, 128>}, {pipeline_mode = #tpu.pipeline_mode<synchronous>, transform_indices = @transform_4, window_bounds = array<i64: 1, 128>}, {pipeline_mode = #tpu.pipeline_mode<synchronous>, transform_indices = @transform_5, window_bounds = array<i64: 128, 128>}, {pipeline_mode = #tpu.pipeline_mode<synchronous>, transform_indices = @transform_6, window_bounds = array<i64: 1, 128>}, {transform_indices = @transform_7, window_bounds = array<i64: 16, 128>}]} {
    %c0 = arith.constant 0 : index
    %c0_0 = arith.constant 0 : index
    %0 = vector.load %arg1[%c0, %c0_0] : memref<16x400xbf16, #tpu.memory_space<vmem>>, vector<16x400xbf16>
    %c0_1 = arith.constant 0 : index
    %c0_2 = arith.constant 0 : index
    %1 = vector.load %arg2[%c0_1, %c0_2] : memref<400x128xbf16, #tpu.memory_space<vmem>>, vector<400x128xbf16>
    %cst = arith.constant dense<0.000000e+00> : vector<16x128xf32>
    %2 = tpu.matmul %0, %1, %cst {dimension_numbers = #tpu.dot_dimension_numbers<[1], [0], [0], [1], [0, 0, 1, 1], [], []>} : vector<16x400xbf16>, vector<400x128xbf16>, vector<16x128xf32> -> vector<16x128xf32>
    %c0_3 = arith.constant 0 : index
    %c0_4 = arith.constant 0 : index
    %3 = vector.load %arg3[%c0_3, %c0_4] : memref<1x128xf32, #tpu.memory_space<vmem>>, vector<1x128xf32>
    %4 = vector.broadcast %3 : vector<1x128xf32> to vector<16x128xf32>
    %5 = arith.addf %2, %4 : vector<16x128xf32>
    %cst_5 = arith.constant 0.000000e+00 : f32
    %6 = vector.broadcast %cst_5 : f32 to vector<16x128xf32>
    %7 = arith.maximumf %5, %6 : vector<16x128xf32>
    %8 = arith.truncf %7 : vector<16x128xf32> to vector<16x128xbf16>
    %c0_6 = arith.constant 0 : index
    %c0_7 = arith.constant 0 : index
    %9 = vector.load %arg4[%c0_6, %c0_7] : memref<128x128xbf16, #tpu.memory_space<vmem>>, vector<128x128xbf16>
    %cst_8 = arith.constant dense<0.000000e+00> : vector<16x128xf32>
    %10 = tpu.matmul %8, %9, %cst_8 {dimension_numbers = #tpu.dot_dimension_numbers<[1], [0], [0], [1], [0, 0, 1, 1], [], []>} : vector<16x128xbf16>, vector<128x128xbf16>, vector<16x128xf32> -> vector<16x128xf32>
    %c0_9 = arith.constant 0 : index
    %c0_10 = arith.constant 0 : index
    %11 = vector.load %arg5[%c0_9, %c0_10] : memref<1x128xf32, #tpu.memory_space<vmem>>, vector<1x128xf32>
    %12 = vector.broadcast %11 : vector<1x128xf32> to vector<16x128xf32>
    %13 = arith.addf %10, %12 : vector<16x128xf32>
    %cst_11 = arith.constant 0.000000e+00 : f32
    %14 = vector.broadcast %cst_11 : f32 to vector<16x128xf32>
    %15 = arith.maximumf %13, %14 : vector<16x128xf32>
    %16 = arith.truncf %15 : vector<16x128xf32> to vector<16x128xbf16>
    %c0_12 = arith.constant 0 : index
    %c0_13 = arith.constant 0 : index
    %17 = vector.load %arg6[%c0_12, %c0_13] : memref<128x128xbf16, #tpu.memory_space<vmem>>, vector<128x128xbf16>
    %cst_14 = arith.constant dense<0.000000e+00> : vector<16x128xf32>
    %18 = tpu.matmul %16, %17, %cst_14 {dimension_numbers = #tpu.dot_dimension_numbers<[1], [0], [0], [1], [0, 0, 1, 1], [], []>} : vector<16x128xbf16>, vector<128x128xbf16>, vector<16x128xf32> -> vector<16x128xf32>
    %c0_15 = arith.constant 0 : index
    %c0_16 = arith.constant 0 : index
    %19 = vector.load %arg7[%c0_15, %c0_16] : memref<1x128xf32, #tpu.memory_space<vmem>>, vector<1x128xf32>
    %20 = vector.broadcast %19 : vector<1x128xf32> to vector<16x128xf32>
    %21 = arith.addf %18, %20 : vector<16x128xf32>
    %c0_17 = arith.constant 0 : index
    %c0_18 = arith.constant 0 : index
    %22 = vector.load %arg8[%c0_17, %c0_18] : memref<16x128xf32, #tpu.memory_space<vmem>>, vector<16x128xf32>
    tpu.vector_store %arg8[%c0_17, %c0_18], %21 {strides = array<i32>} : memref<16x128xf32, #tpu.memory_space<vmem>>, vector<16x128xf32>,
    return
  }
  func.func @transform_0(%arg0: i32) -> (i32, i32) {
    %c0_i32 = arith.constant 0 : i32
    %c0_i32_0 = arith.constant 0 : i32
    return %arg0, %c0_i32 : i32, i32
  }
  func.func @transform_1(%arg0: i32) -> (i32, i32) {
    %c0_i32 = arith.constant 0 : i32
    %c0_i32_0 = arith.constant 0 : i32
    %c0_i32_1 = arith.constant 0 : i32
    return %c0_i32, %c0_i32_0 : i32, i32
  }
  func.func @transform_2(%arg0: i32) -> (i32, i32) {
    %c0_i32 = arith.constant 0 : i32
    %c0_i32_0 = arith.constant 0 : i32
    %c0_i32_1 = arith.constant 0 : i32
    return %c0_i32, %c0_i32_0 : i32, i32
  }
  func.func @transform_3(%arg0: i32) -> (i32, i32) {
    %c0_i32 = arith.constant 0 : i32
    %c0_i32_0 = arith.constant 0 : i32
    %c0_i32_1 = arith.constant 0 : i32
    return %c0_i32, %c0_i32_0 : i32, i32
  }
  func.func @transform_4(%arg0: i32) -> (i32, i32) {
    %c0_i32 = arith.constant 0 : i32
    %c0_i32_0 = arith.constant 0 : i32
    %c0_i32_1 = arith.constant 0 : i32
    return %c0_i32, %c0_i32_0 : i32, i32
  }
  func.func @transform_5(%arg0: i32) -> (i32, i32) {
    %c0_i32 = arith.constant 0 : i32
    %c0_i32_0 = arith.constant 0 : i32
    %c0_i32_1 = arith.constant 0 : i32
    return %c0_i32, %c0_i32_0 : i32, i32
  }
  func.func @transform_6(%arg0: i32) -> (i32, i32) {
    %c0_i32 = arith.constant 0 : i32
    %c0_i32_0 = arith.constant 0 : i32
    %c0_i32_1 = arith.constant 0 : i32
    return %c0_i32, %c0_i32_0 : i32, i32
  }
  func.func @transform_7(%arg0: i32) -> (i32, i32) {
    %c0_i32 = arith.constant 0 : i32
    %c0_i32_0 = arith.constant 0 : i32
    return %arg0, %c0_i32 : i32, i32
  }
}

</mosaic_0001>

<llo_original>
// kernel: lenet_forward.3
$region0: #{lenet_forward.3}
  #allocation0 [shape = 'u32[]', space=smem, size = 0x4, offset = 0x4, fixed_abs, tag = 'smem constant byte address 0x4 - core index']
  #allocation1 [shape = 'u32[144,128]{1,0:T(1,128)}', space=vmem, size = 0x12000, scoped, tag = 'internal scratch']
  %s0 = inlined_call_operand.vmem [shape: bf16[4,448,25], index: 0, kind: input, shape index: {}]
  %s1 = inlined_call_operand.vmem [shape: bf16[25,128], index: 1, kind: input, shape index: {}]
  %s2 = inlined_call_operand.vmem [shape: f32[1,128], index: 2, kind: input, shape index: {}]
  %s3 = inlined_call_operand.vmem [shape: bf16[448,128], index: 3, kind: output, shape index: {}]
  %s4 = sld [smem:[#allocation0]]
  $region86: #{lenet_forward.3} parent=0
    _
  %s6 = ssub.s32 1, %s4
  %s7 = scalar_select 0, %s6, %s4
  $region1: #{lenet_forward.3} parent=0
    #allocation2 [shape = 'u8[131072]{0}', space=vmem, size = 0x20000, scoped, tag = 'input window, operand 0']
    loop: start=0, step=1, limit=9
    $region2: #{lenet_forward.3} parent=1 // loop_pre_header
      _
    $region3: #{lenet_forward.3} parent=1 // loop_header
      %s9 = sphi 0, %s13
      %p10 = scmp.ge.s32.totalorder %s9, 9
      %s19 = sphi 0, %s21
      %s22 = sphi 0, %s19
      %s23 = sphi 0, %s22
      %s39 = sphi 0, %s23
      %s43 = sphi 0, %s43
      %s45 = sphi 0, %s43
      %s46 = sphi 0, %s45
      %s60 = sphi 0, %s46
      %s64 = sphi 0, %s64
      %s66 = sphi 0, %s64
      %s67 = sphi 0, %s66
      %s81 = sphi 0, %s67
      %s87 = sphi 0, %s89
      %s90 = sphi 0, %s87
      %s91 = sphi 0, %s90
      %s107 = sphi 0, %s91
    $region4: #{lenet_forward.3} parent=1 // loop_header_branch
      %12 = sbr.rel (%p10) target = $region8
    $region5: #{lenet_forward.3} parent=1 // loop_body
      %s14 = ssub.s32 %s9, 1
      %s15 = ssub.s32 %s9, 2
      %s16 = sadd.s32 %s9, 1
      %s17 = ssub.s32 %s9, %s16
      %p18 = scmp.eq.s32.totalorder %s17, 0
      %s20 = sadd.s32 %s19, 1
      %s21 = scalar_select %p18, %s19, %s20
      %p24 = pneg %p18
      %p25 = scmp.eq.s32.totalorder %s9, 6
      %p26 = por %p24, %p25
      %p27 = scmp.ne.s32.totalorder %s19, %s22
      %p28 = scmp.eq.s32.totalorder %s9, 0
      %p29 = por %p27, %p28
      %p30 = scmp.ne.s32.totalorder %s19, %s22
      %p31 = scmp.eq.s32.totalorder %s14, 6
      %p32 = por %p30, %p31
      %p33 = scmp.ne.s32.totalorder %s22, %s23
      %p34 = scmp.eq.s32.totalorder %s14, 0
      %p35 = por %p33, %p34
      %p36 = scmp.ne.s32.totalorder %s22, %s23
      %p37 = scmp.eq.s32.totalorder %s15, 6
      %p38 = por %p36, %p37
      %p40 = scmp.ne.s32.totalorder %s23, %s39
      %p41 = scmp.eq.s32.totalorder %s15, 0
      %p42 = por %p40, %p41
      %s44 = sadd.s32 %s43, 1
      %p47 = scmp.eq.s32.totalorder %s9, 6
      %p48 = scmp.ne.s32.totalorder %s43, %s45
      %p49 = scmp.eq.s32.totalorder %s9, 0
      %p50 = por %p48, %p49
      %p51 = scmp.ne.s32.totalorder %s43, %s45
      %p52 = scmp.eq.s32.totalorder %s14, 6
      %p53 = por %p51, %p52
      %p54 = scmp.ne.s32.totalorder %s45, %s46
      %p55 = scmp.eq.s32.totalorder %s14, 0
      %p56 = por %p54, %p55
      %p57 = scmp.ne.s32.totalorder %s45, %s46
      %p58 = scmp.eq.s32.totalorder %s15, 6
      %p59 = por %p57, %p58
      %p61 = scmp.ne.s32.totalorder %s46, %s60
      %p62 = scmp.eq.s32.totalorder %s15, 0
      %p63 = por %p61, %p62
      %s65 = sadd.s32 %s64, 1
      %p68 = scmp.eq.s32.totalorder %s9, 6
      %p69 = scmp.ne.s32.totalorder %s64, %s66
      %p70 = scmp.eq.s32.totalorder %s9, 0
      %p71 = por %p69, %p70
      %p72 = scmp.ne.s32.totalorder %s64, %s66
      %p73 = scmp.eq.s32.totalorder %s14, 6
      %p74 = por %p72, %p73
      %p75 = scmp.ne.s32.totalorder %s66, %s67
      %p76 = scmp.eq.s32.totalorder %s14, 0
      %p77 = por %p75, %p76
      %p78 = scmp.ne.s32.totalorder %s66, %s67
      %p79 = scmp.eq.s32.totalorder %s15, 6
      %p80 = por %p78, %p79
      %p82 = scmp.ne.s32.totalorder %s67, %s81
      %p83 = scmp.eq.s32.totalorder %s15, 0
      %p84 = por %p82, %p83
      %s85 = ssub.s32 %s9, %s16
      %p86 = scmp.eq.s32.totalorder %s85, 0
      %s88 = sadd.s32 %s87, 1
      %s89 = scalar_select %p86, %s87, %s88
      %p92 = pneg %p86
      %p93 = scmp.eq.s32.totalorder %s9, 6
      %p94 = por %p92, %p93
      %p95 = scmp.ne.s32.totalorder %s87, %s90
      %p96 = scmp.eq.s32.totalorder %s9, 0
      %p97 = por %p95, %p96
      %p98 = scmp.ne.s32.totalorder %s87, %s90
      %p99 = scmp.eq.s32.totalorder %s14, 6
      %p100 = por %p98, %p99
      %p101 = scmp.ne.s32.totalorder %s90, %s91
      %p102 = scmp.eq.s32.totalorder %s14, 0
      %p103 = por %p101, %p102
      %p104 = scmp.ne.s32.totalorder %s90, %s91
      %p105 = scmp.eq.s32.totalorder %s15, 6
      %p106 = por %p104, %p105
      %p108 = scmp.ne.s32.totalorder %s91, %s107
      %p109 = scmp.eq.s32.totalorder %s15, 0
      %p110 = por %p108, %p109
      %p111 = scmp.le.s32.totalorder 1, %s9
      %p112 = scmp.lt.s32.totalorder %s9, 8
      %p113 = pnand %p111, %p112
      %p114 = pneg %p113
      // Predicated region
      $region9: #{lenet_forward.3} parent=5 // pred_check
        _
      $region10: #{lenet_forward.3} parent=5 // pred_check_branch
        %116 = sbr.rel (%p113) target = $region12
      $region11: #{lenet_forward.3} parent=5 // pred_region
        %s117 = ssub.s32 %s9, 1
        // Predicated region
        $region13: #{lenet_forward.3} parent=11 // pred_check
          %p118 = pneg %p56
        $region14: #{lenet_forward.3} parent=11 // pred_check_branch
          %120 = sbr.rel (%p118) target = $region16
        $region15: #{lenet_forward.3} parent=11 // pred_region
          _
        $region16: #{lenet_forward.3} parent=11 // pred_fallthru
          _
        // Predicated region
        $region17: #{lenet_forward.3} parent=11 // pred_check
          %p121 = pneg %p77
        $region18: #{lenet_forward.3} parent=11 // pred_check_branch
          %123 = sbr.rel (%p121) target = $region20
        $region19: #{lenet_forward.3} parent=11 // pred_region
          _
        $region20: #{lenet_forward.3} parent=11 // pred_fallthru
          _
      $region12: #{lenet_forward.3} parent=5 // pred_fallthru
        _
      %p124 = scmp.lt.s32.totalorder %s9, 7
      // Predicated region
      $region21: #{lenet_forward.3} parent=5 // pred_check
        %p125 = pneg %p124
      $region22: #{lenet_forward.3} parent=5 // pred_check_branch
        %127 = sbr.rel (%p125) target = $region24
      $region23: #{lenet_forward.3} parent=5 // pred_region
        // Predicated region
        $region25: #{lenet_forward.3} parent=23 // pred_check
          %p128 = pneg %p29
        $region26: #{lenet_forward.3} parent=23 // pred_check_branch
          %130 = sbr.rel (%p128) target = $region28
        $region27: #{lenet_forward.3} parent=23 // pred_region
          %s131 = sand.u32 %s19, 1
          %s132 = sand.u32 %s19, 1
          %s133 = smul.addr %s132, 128
          %s134 = scalar_lea.vmem [#allocation2], %s133
          %s135 = smul.u32 8, %s9
          %s136 = smul.addr %s135, 4
          %s137 = scalar_lea.vmem %s0, %s136
          // Predicated region
          $region29: #{lenet_forward.3} parent=27 // pred_check
            _
          $region30: #{lenet_forward.3} parent=27 // pred_check_branch
            %139 = sbr.rel (0) target = $region32
          $region31: #{lenet_forward.3} parent=27 // pred_region
            // Predicated region
            $region33: #{lenet_forward.3} parent=31 // pred_check
              _
            $region34: #{lenet_forward.3} parent=31 // pred_check_branch
              %141 = sbr.rel target = $region36
            $region35: #{lenet_forward.3} parent=31 // pred_region
              // Predicated region
              $region48: #{lenet_forward.3} parent=35 // pred_check
                _
              $region49: #{lenet_forward.3} parent=35 // pred_check_branch
                %218 = sbr.rel (0) target = $region51
              $region50: #{lenet_forward.3} parent=35 // pred_region
                loop: start=0, step=1, limit=1
                $region52: #{lenet_forward.3} parent=50 // loop_pre_header
                  _
                $region53: #{lenet_forward.3} parent=50 // loop_header
                  %s220 = sphi 0, %s224
                  %p221 = scmp.ge.s32.totalorder %s220, 1
                  %s225 = sphi %s137, %s137
                  %s226 = sphi %s134, %s134
                $region54: #{lenet_forward.3} parent=50 // loop_header_branch
                  %223 = sbr.rel (%p221) target = $region58
                $region55: #{lenet_forward.3} parent=50 // loop_body
                  _
                $region56: #{lenet_forward.3} parent=50 // loop_footer
                  %s224 = sadd.s32 1, %s220
                $region57: #{lenet_forward.3} parent=50 // loop_footer_branch
                  %219 = sbr.rel target = $region53
                $region58: #{lenet_forward.3} parent=50 // loop_exit
                  _
                loop: start=0, step=1, limit=1
                $region59: #{lenet_forward.3} parent=50 // loop_pre_header
                  _
                $region60: #{lenet_forward.3} parent=50 // loop_header
                  %s229 = sphi 0, %s233
                  %p230 = scmp.ge.s32.totalorder %s229, 1
                  %s234 = sphi %s137, %s137
                  %s235 = sphi %s134, %s134
                $region61: #{lenet_forward.3} parent=50 // loop_header_branch
                  %232 = sbr.rel (%p230) target = $region65
                $region62: #{lenet_forward.3} parent=50 // loop_body
                  %v236 = vld [vmem:[%s234] sm:$0xf]
                  %237 = vst [vmem:[%s235] sm:$0xf] %v236
                  %v238 = vld [vmem:[%s234 + $0x4] sm:$0xf]
                  %239 = vst [vmem:[%s235 + $0x4] sm:$0xf] %v238
                  %v240 = vld [vmem:[%s234 + $0x8] sm:$0xf]
                  %241 = vst [vmem:[%s235 + $0x8] sm:$0xf] %v240
                  %v242 = vld [vmem:[%s234 + $0xc] sm:$0xf]
                  %243 = vst [vmem:[%s235 + $0xc] sm:$0xf] %v242
                  %v244 = vld [vmem:[%s234 + $0x10] sm:$0xf]
                  %245 = vst [vmem:[%s235 + $0x10] sm:$0xf] %v244
                  %v246 = vld [vmem:[%s234 + $0x14] sm:$0xf]
                  %247 = vst [vmem:[%s235 + $0x14] sm:$0xf] %v246
                  %v248 = vld [vmem:[%s234 + $0x18] sm:$0xf]
                  %249 = vst [vmem:[%s235 + $0x18] sm:$0xf] %v248
                  %v250 = vld [vmem:[%s234 + $0x1c] sm:$0xf]
                  %251 = vst [vmem:[%s235 + $0x1c] sm:$0xf] %v250
                  %v252 = vld [vmem:[%s234 + $0xe0] sm:$0xf]
                  %253 = vst [vmem:[%s235 + $0x20] sm:$0xf] %v252
                  %v254 = vld [vmem:[%s234 + $0xe4] sm:$0xf]
                  %255 = vst [vmem:[%s235 + $0x24] sm:$0xf] %v254
                  %v256 = vld [vmem:[%s234 + $0xe8] sm:$0xf]
                  %257 = vst [vmem:[%s235 + $0x28] sm:$0xf] %v256
                  %v258 = vld [vmem:[%s234 + $0xec] sm:$0xf]
                  %259 = vst [vmem:[%s235 + $0x2c] sm:$0xf] %v258
                  %v260 = vld [vmem:[%s234 + $0xf0] sm:$0xf]
                  %261 = vst [vmem:[%s235 + $0x30] sm:$0xf] %v260
                  %v262 = vld [vmem:[%s234 + $0xf4] sm:$0xf]
                  %263 = vst [vmem:[%s235 + $0x34] sm:$0xf] %v262
                  %v264 = vld [vmem:[%s234 + $0xf8] sm:$0xf]
                  %265 = vst [vmem:[%s235 + $0x38] sm:$0xf] %v264
                  %v266 = vld [vmem:[%s234 + $0xfc] sm:$0xf]
                  %267 = vst [vmem:[%s235 + $0x3c] sm:$0xf] %v266
                  %v268 = vld [vmem:[%s234 + $0x1c0] sm:$0xf]
                  %269 = vst [vmem:[%s235 + $0x40] sm:$0xf] %v268
                  %v270 = vld [vmem:[%s234 + $0x1c4] sm:$0xf]
                  %271 = vst [vmem:[%s235 + $0x44] sm:$0xf] %v270
                  %v272 = vld [vmem:[%s234 + $0x1c8] sm:$0xf]
                  %273 = vst [vmem:[%s235 + $0x48] sm:$0xf] %v272
                  %v274 = vld [vmem:[%s234 + $0x1cc] sm:$0xf]
                  %275 = vst [vmem:[%s235 + $0x4c] sm:$0xf] %v274
                  %v276 = vld [vmem:[%s234 + $0x1d0] sm:$0xf]
                  %277 = vst [vmem:[%s235 + $0x50] sm:$0xf] %v276
                  %v278 = vld [vmem:[%s234 + $0x1d4] sm:$0xf]
                  %279 = vst [vmem:[%s235 + $0x54] sm:$0xf] %v278
                  %v280 = vld [vmem:[%s234 + $0x1d8] sm:$0xf]
                  %281 = vst [vmem:[%s235 + $0x58] sm:$0xf] %v280
                  %v282 = vld [vmem:[%s234 + $0x1dc] sm:$0xf]
                  %283 = vst [vmem:[%s235 + $0x5c] sm:$0xf] %v282
                  %v284 = vld [vmem:[%s234 + $0x2a0] sm:$0xf]
                  %285 = vst [vmem:[%s235 + $0x60] sm:$0xf] %v284
                  %v286 = vld [vmem:[%s234 + $0x2a4] sm:$0xf]
                  %287 = vst [vmem:[%s235 + $0x64] sm:$0xf] %v286
                  %v288 = vld [vmem:[%s234 + $0x2a8] sm:$0xf]
                  %289 = vst [vmem:[%s235 + $0x68] sm:$0xf] %v288
                  %v290 = vld [vmem:[%s234 + $0x2ac] sm:$0xf]
                  %291 = vst [vmem:[%s235 + $0x6c] sm:$0xf] %v290
                  %v292 = vld [vmem:[%s234 + $0x2b0] sm:$0xf]
                  %293 = vst [vmem:[%s235 + $0x70] sm:$0xf] %v292
                  %v294 = vld [vmem:[%s234 + $0x2b4] sm:$0xf]
                  %295 = vst [vmem:[%s235 + $0x74] sm:$0xf] %v294
                  %v296 = vld [vmem:[%s234 + $0x2b8] sm:$0xf]
                  %297 = vst [vmem:[%s235 + $0x78] sm:$0xf] %v296
                  %v298 = vld [vmem:[%s234 + $0x2bc] sm:$0xf]
                  %299 = vst [vmem:[%s235 + $0x7c] sm:$0xf] %v298
                $region63: #{lenet_forward.3} parent=50 // loop_footer
                  %s233 = sadd.s32 1, %s229
                $region64: #{lenet_forward.3} parent=50 // loop_footer_branch
                  %228 = sbr.rel target = $region60
                $region65: #{lenet_forward.3} parent=50 // loop_exit
                  _
              $region51: #{lenet_forward.3} parent=35 // pred_fallthru
                _
            $region36: #{lenet_forward.3} parent=31 // pred_fallthru
              _
            // Predicated region
            $region37: #{lenet_forward.3} parent=31 // pred_check
              _
            $region38: #{lenet_forward.3} parent=31 // pred_check_branch
              %143 = sbr.rel (0) target = $region40
            $region39: #{lenet_forward.3} parent=31 // pred_region
              loop: start=0, step=1, limit=1
              $region41: #{lenet_forward.3} parent=39 // loop_pre_header
                _
              $region42: #{lenet_forward.3} parent=39 // loop_header
                %s146 = sphi 0, %s150
                %p147 = scmp.ge.s32.totalorder %s146, 1
                %s151 = sphi %s137, %s137
                %s152 = sphi %s134, %s134
              $region43: #{lenet_forward.3} parent=39 // loop_header_branch
                %149 = sbr.rel (%p147) target = $region47
              $region44: #{lenet_forward.3} parent=39 // loop_body
                %v153 = vld [vmem:[%s151] sm:$0xf]
                %154 = vst [vmem:[%s152] sm:$0xf] %v153
                %v155 = vld [vmem:[%s151 + $0x4] sm:$0xf]
                %156 = vst [vmem:[%s152 + $0x4] sm:$0xf] %v155
                %v157 = vld [vmem:[%s151 + $0x8] sm:$0xf]
                %158 = vst [vmem:[%s152 + $0x8] sm:$0xf] %v157
                %v159 = vld [vmem:[%s151 + $0xc] sm:$0xf]
                %160 = vst [vmem:[%s152 + $0xc] sm:$0xf] %v159
                %v161 = vld [vmem:[%s151 + $0x10] sm:$0xf]
                %162 = vst [vmem:[%s152 + $0x10] sm:$0xf] %v161
                %v163 = vld [vmem:[%s151 + $0x14] sm:$0xf]
                %164 = vst [vmem:[%s152 + $0x14] sm:$0xf] %v163
                %v165 = vld [vmem:[%s151 + $0x18] sm:$0xf]
                %166 = vst [vmem:[%s152 + $0x18] sm:$0xf] %v165
                %v167 = vld [vmem:[%s151 + $0x1c] sm:$0xf]
                %168 = vst [vmem:[%s152 + $0x1c] sm:$0xf] %v167
                %v169 = vld [vmem:[%s151 + $0xe0] sm:$0xf]
                %170 = vst [vmem:[%s152 + $0x20] sm:$0xf] %v169
                %v171 = vld [vmem:[%s151 + $0xe4] sm:$0xf]
                %172 = vst [vmem:[%s152 + $0x24] sm:$0xf] %v171
                %v173 = vld [vmem:[%s151 + $0xe8] sm:$0xf]
                %174 = vst [vmem:[%s152 + $0x28] sm:$0xf] %v173
                %v175 = vld [vmem:[%s151 + $0xec] sm:$0xf]
                %176 = vst [vmem:[%s152 + $0x2c] sm:$0xf] %v175
                %v177 = vld [vmem:[%s151 + $0xf0] sm:$0xf]
                %178 = vst [vmem:[%s152 + $0x30] sm:$0xf] %v177
                %v179 = vld [vmem:[%s151 + $0xf4] sm:$0xf]
                %180 = vst [vmem:[%s152 + $0x34] sm:$0xf] %v179
                %v181 = vld [vmem:[%s151 + $0xf8] sm:$0xf]
                %182 = vst [vmem:[%s152 + $0x38] sm:$0xf] %v181
                %v183 = vld [vmem:[%s151 + $0xfc] sm:$0xf]
                %184 = vst [vmem:[%s152 + $0x3c] sm:$0xf] %v183
                %v185 = vld [vmem:[%s151 + $0x1c0] sm:$0xf]
                %186 = vst [vmem:[%s152 + $0x40] sm:$0xf] %v185
                %v187 = vld [vmem:[%s151 + $0x1c4] sm:$0xf]
                %188 = vst [vmem:[%s152 + $0x44] sm:$0xf] %v187
                %v189 = vld [vmem:[%s151 + $0x1c8] sm:$0xf]
                %190 = vst [vmem:[%s152 + $0x48] sm:$0xf] %v189
                %v191 = vld [vmem:[%s151 + $0x1cc] sm:$0xf]
                %192 = vst [vmem:[%s152 + $0x4c] sm:$0xf] %v191
                %v193 = vld [vmem:[%s151 + $0x1d0] sm:$0xf]
                %194 = vst [vmem:[%s152 + $0x50] sm:$0xf] %v193
                %v195 = vld [vmem:[%s151 + $0x1d4] sm:$0xf]
                %196 = vst [vmem:[%s152 + $0x54] sm:$0xf] %v195
                %v197 = vld [vmem:[%s151 + $0x1d8] sm:$0xf]
                %198 = vst [vmem:[%s152 + $0x58] sm:$0xf] %v197
                %v199 = vld [vmem:[%s151 + $0x1dc] sm:$0xf]
                %200 = vst [vmem:[%s152 + $0x5c] sm:$0xf] %v199
                %v201 = vld [vmem:[%s151 + $0x2a0] sm:$0xf]
                %202 = vst [vmem:[%s152 + $0x60] sm:$0xf] %v201
                %v203 = vld [vmem:[%s151 + $0x2a4] sm:$0xf]
                %204 = vst [vmem:[%s152 + $0x64] sm:$0xf] %v203
                %v205 = vld [vmem:[%s151 + $0x2a8] sm:$0xf]
                %206 = vst [vmem:[%s152 + $0x68] sm:$0xf] %v205
                %v207 = vld [vmem:[%s151 + $0x2ac] sm:$0xf]
                %208 = vst [vmem:[%s152 + $0x6c] sm:$0xf] %v207
                %v209 = vld [vmem:[%s151 + $0x2b0] sm:$0xf]
                %210 = vst [vmem:[%s152 + $0x70] sm:$0xf] %v209
                %v211 = vld [vmem:[%s151 + $0x2b4] sm:$0xf]
                %212 = vst [vmem:[%s152 + $0x74] sm:$0xf] %v211
                %v213 = vld [vmem:[%s151 + $0x2b8] sm:$0xf]
                %214 = vst [vmem:[%s152 + $0x78] sm:$0xf] %v213
                %v215 = vld [vmem:[%s151 + $0x2bc] sm:$0xf]
                %216 = vst [vmem:[%s152 + $0x7c] sm:$0xf] %v215
              $region45: #{lenet_forward.3} parent=39 // loop_footer
                %s150 = sadd.s32 1, %s146
              $region46: #{lenet_forward.3} parent=39 // loop_footer_branch
                %145 = sbr.rel target = $region42
              $region47: #{lenet_forward.3} parent=39 // loop_exit
                _
            $region40: #{lenet_forward.3} parent=31 // pred_fallthru
              _
          $region32: #{lenet_forward.3} parent=27 // pred_fallthru
            _
          %300 = vnop
        $region28: #{lenet_forward.3} parent=23 // pred_fallthru
          _
      $region24: #{lenet_forward.3} parent=5 // pred_fallthru
        _
      %p301 = scmp.le.s32.totalorder 1, %s9
      %p302 = scmp.lt.s32.totalorder %s9, 8
      %p303 = pnand %p301, %p302
      %p304 = pneg %p303
      // Predicated region
      $region66: #{lenet_forward.3} parent=5 // pred_check
        _
      $region67: #{lenet_forward.3} parent=5 // pred_check_branch
        %306 = sbr.rel (%p303) target = $region69
      $region68: #{lenet_forward.3} parent=5 // pred_region
        %s307 = ssub.s32 %s9, 1
        %s308 = sand.u32 %s22, 1
        %s309 = sand.u32 %s22, 1
        %s310 = smul.addr %s309, 128
        %s311 = scalar_lea.vmem [#allocation2], %s310
        // Predicated region
        $region70: #{lenet_forward.3} parent=68 // pred_check
          %p312 = pneg %p35
        $region71: #{lenet_forward.3} parent=68 // pred_check_branch
          %314 = sbr.rel (%p312) target = $region73
        $region72: #{lenet_forward.3} parent=68 // pred_region
          _
        $region73: #{lenet_forward.3} parent=68 // pred_fallthru
          _
        %s315 = sand.u32 %s22, 1
        %s316 = sand.u32 %s22, 1
        %s317 = smul.addr %s316, 128
        %s318 = scalar_lea.vmem [#allocation2], %s317
        %p319 = pneg %p35
        %p320 = pneg %p32
        %p321 = pneg %p56
        %p322 = pneg %p53
        %p323 = pneg %p77
        %p324 = pneg %p74
        %p325 = pneg %p103
        %p326 = pneg %p100
        %s327 = smul.u32 8, %s14
        %p328 = scmp.lt.s32.totalorder %s327, 55
        %s329 = scalar_select %p328, %s327, 55
        %s330 = smul.addr %s329, 4
        %s331 = scalar_lea.vmem %s3, %s330
        %s332 = smul.u32 8, %s14
        %s333 = smul.u32 8, %s14
        %p334 = scmp.lt.s32.totalorder %s333, 55
        %s335 = scalar_select %p334, %s333, 55
        %s336 = smul.addr %s335, 4
        %s337 = scalar_lea.vmem %s3, %s336
        %s338 = smul.u32 8, %s14
        %v340 = vld [vmem:[%s311] sm:$0xf]
        %v341 = vld [vmem:[%s311 + $0x4] sm:$0xf]
        %v342 = vld [vmem:[%s311 + $0x8] sm:$0xf]
        %v343 = vld [vmem:[%s311 + $0xc] sm:$0xf]
        %v344 = vld [vmem:[%s311 + $0x10] sm:$0xf]
        %v345 = vld [vmem:[%s311 + $0x14] sm:$0xf]
        %v346 = vld [vmem:[%s311 + $0x18] sm:$0xf]
        %v347 = vld [vmem:[%s311 + $0x1c] sm:$0xf]
        %v348 = vld [vmem:[%s311 + $0x20] sm:$0xf]
        %v349 = vld [vmem:[%s311 + $0x24] sm:$0xf]
        %v350 = vld [vmem:[%s311 + $0x28] sm:$0xf]
        %v351 = vld [vmem:[%s311 + $0x2c] sm:$0xf]
        %v352 = vld [vmem:[%s311 + $0x30] sm:$0xf]
        %v353 = vld [vmem:[%s311 + $0x34] sm:$0xf]
        %v354 = vld [vmem:[%s311 + $0x38] sm:$0xf]
        %v355 = vld [vmem:[%s311 + $0x3c] sm:$0xf]
        %v356 = vld [vmem:[%s311 + $0x40] sm:$0xf]
        %v357 = vld [vmem:[%s311 + $0x44] sm:$0xf]
        %v358 = vld [vmem:[%s311 + $0x48] sm:$0xf]
        %v359 = vld [vmem:[%s311 + $0x4c] sm:$0xf]
        %v360 = vld [vmem:[%s311 + $0x50] sm:$0xf]
        %v361 = vld [vmem:[%s311 + $0x54] sm:$0xf]
        %v362 = vld [vmem:[%s311 + $0x58] sm:$0xf]
        %v363 = vld [vmem:[%s311 + $0x5c] sm:$0xf]
        %v364 = vld [vmem:[%s311 + $0x60] sm:$0xf]
        %v365 = vld [vmem:[%s311 + $0x64] sm:$0xf]
        %v366 = vld [vmem:[%s311 + $0x68] sm:$0xf]
        %v367 = vld [vmem:[%s311 + $0x6c] sm:$0xf]
        %v368 = vld [vmem:[%s311 + $0x70] sm:$0xf]
        %v369 = vld [vmem:[%s311 + $0x74] sm:$0xf]
        %v370 = vld [vmem:[%s311 + $0x78] sm:$0xf]
        %v371 = vld [vmem:[%s311 + $0x7c] sm:$0xf]
        %v372 = vld [vmem:[%s1] sm:$0xf]
        %v373 = vld [vmem:[%s1 + $0x4] sm:$0xf]
        %v374 = vld [vmem:[%s1 + $0x8] sm:$0xf]
        %v375 = vld [vmem:[%s1 + $0xc] sm:$0x1]
        %v408 = vunpack.c.l.b16 %v340
        %v409 = vunpack.c.l.b16 %v341
        %v410 = vunpack.c.l.b16 %v342
        %v411 = vunpack.c.l.b16 %v343
        %v412 = vunpack.c.l.b16 %v344
        %v413 = vunpack.c.l.b16 %v345
        %v414 = vunpack.c.l.b16 %v346
        %v415 = vunpack.c.l.b16 %v347
        %v416 = vunpack.c.l.b16 %v348
        %v417 = vunpack.c.l.b16 %v349
        %v418 = vunpack.c.l.b16 %v350
        %v419 = vunpack.c.l.b16 %v351
        %v420 = vunpack.c.l.b16 %v352
        %v421 = vunpack.c.l.b16 %v353
        %v422 = vunpack.c.l.b16 %v354
        %v423 = vunpack.c.l.b16 %v355
        %v424 = vunpack.c.l.b16 %v356
        %v425 = vunpack.c.l.b16 %v357
        %v426 = vunpack.c.l.b16 %v358
        %v427 = vunpack.c.l.b16 %v359
        %v428 = vunpack.c.l.b16 %v360
        %v429 = vunpack.c.l.b16 %v361
        %v430 = vunpack.c.l.b16 %v362
        %v431 = vunpack.c.l.b16 %v363
        %v432 = vunpack.c.l.b16 %v364
        %v433 = vunpack.c.l.b16 %v365
        %v434 = vunpack.c.l.b16 %v366
        %v435 = vunpack.c.l.b16 %v367
        %v436 = vunpack.c.l.b16 %v368
        %v437 = vunpack.c.l.b16 %v369
        %v438 = vunpack.c.l.b16 %v370
        %v439 = vunpack.c.l.b16 %v371
        %v440 = vpack.c.b16 %v409, %v408
        %v441 = vpack.c.b16 %v411, %v410
        %v442 = vpack.c.b16 %v413, %v412
        %v443 = vpack.c.b16 %v415, %v414
        %v444 = vpack.c.b16 %v417, %v416
        %v445 = vpack.c.b16 %v419, %v418
        %v446 = vpack.c.b16 %v421, %v420
        %v447 = vpack.c.b16 %v423, %v422
        %v448 = vpack.c.b16 %v425, %v424
        %v449 = vpack.c.b16 %v427, %v426
        %v450 = vpack.c.b16 %v429, %v428
        %v451 = vpack.c.b16 %v431, %v430
        %v452 = vpack.c.b16 %v433, %v432
        %v453 = vpack.c.b16 %v435, %v434
        %v454 = vpack.c.b16 %v437, %v436
        %v455 = vpack.c.b16 %v439, %v438
        %v460 = vunpack.c.l.b16 %v372
        %v461 = vunpack.c.l.b16 %v373
        %v462 = vunpack.c.l.b16 %v374
        %v463 = vunpack.c.l.b16 %v375
        %v464 = vpack.c.b16 %v461, %v460
        %v465 = vpack.c.b16 %v463, %v462
        %vm467 = vcmask 203776
        %v469 = vsel %vm467, %v440, 0
        %v472 = vsel %vm467, %v441, 0
        %v475 = vsel %vm467, %v442, 0
        %v478 = vsel %vm467, %v443, 0
        %v481 = vsel %vm467, %v444, 0
        %v484 = vsel %vm467, %v445, 0
        %v487 = vsel %vm467, %v446, 0
        %v490 = vsel %vm467, %v447, 0
        %v493 = vsel %vm467, %v448, 0
        %v496 = vsel %vm467, %v449, 0
        %v499 = vsel %vm467, %v450, 0
        %v502 = vsel %vm467, %v451, 0
        %v505 = vsel %vm467, %v452, 0
        %v508 = vsel %vm467, %v453, 0
        %v511 = vsel %vm467, %v454, 0
        %v514 = vsel %vm467, %v455, 0
        %vm516 = vcmask 1043456
        %vm517 = vcmask 1044480
        %v518 = vsel %vm516, 4294967295, 65535
        %v519 = vsel %vm517, %v518, 0
        %v521 = vand.u32 %v465, %v519
        %523 = vmatprep.subr.bf16.mxu0 0
        %524 = vmatpush1.bf16.msra.mxu0 %v464
        %525 = vmatprep.subr.bf16.mxu0 0
        %526 = vmatpush1.bf16.msra.mxu0 %v521
        %527 = vmatprep.subr.bf16.mxu0 0
        %528 = vmatpush1.bf16.msra.mxu0 0
        %529 = vmatprep.subr.bf16.mxu0 0
        %530 = vmatpush1.bf16.msra.mxu0 0
        %531 = vmatprep.subr.bf16.mxu0 0
        %532 = vmatpush1.bf16.msra.mxu0 0
        %533 = vmatprep.subr.bf16.mxu0 0
        %534 = vmatpush1.bf16.msra.mxu0 0
        %535 = vmatprep.subr.bf16.mxu0 0
        %536 = vmatpush1.bf16.msra.mxu0 0
        %537 = vmatprep.subr.bf16.mxu0 0
        %538 = vmatpush1.bf16.msra.mxu0 0
        %539 = vmatprep.subr.bf16.mxu0 0
        %540 = vmatpush1.bf16.msra.mxu0 0
        %541 = vmatprep.subr.bf16.mxu0 0
        %542 = vmatpush1.bf16.msra.mxu0 0
        %543 = vmatprep.subr.bf16.mxu0 0
        %544 = vmatpush1.bf16.msra.mxu0 0
        %545 = vmatprep.subr.bf16.mxu0 0
        %546 = vmatpush1.bf16.msra.mxu0 0
        %547 = vmatprep.subr.bf16.mxu0 0
        %548 = vmatpush1.bf16.msra.mxu0 0
        %549 = vmatprep.subr.bf16.mxu0 0
        %550 = vmatpush1.bf16.msra.mxu0 0
        %551 = vmatprep.subr.bf16.mxu0 0
        %552 = vmatpush1.bf16.msra.mxu0 0
        %553 = vmatprep.subr.bf16.mxu0 0
        %554 = vmatpush1.bf16.msra.mxu0 0
        %555 = vmatprep.mubr.bf16.mxu0 0
        %556 = vmatmul.mubr.bf16.gmra.mrb[0].mxu0 %v469
        %v557 = vpop.f32.mrb[0].mxu0
        %v558 = vadd.f32 0.0, %v557
        %v559 = vpop.f32.mrb[0].mxu0
        %v560 = vpop.f32.mrb[0].mxu0
        %v561 = vadd.f32 0.0, %v560
        %v562 = vpop.f32.mrb[0].mxu0
        %563 = vmatprep.mubr.bf16.mxu0 0
        %564 = vmatmul.mubr.bf16.gmra.mrb[0].mxu0 %v472
        %v565 = vpop.f32.mrb[0].mxu0
        %v566 = vadd.f32 0.0, %v565
        %v567 = vpop.f32.mrb[0].mxu0
        %v568 = vpop.f32.mrb[0].mxu0
        %v569 = vadd.f32 0.0, %v568
        %v570 = vpop.f32.mrb[0].mxu0
        %571 = vmatprep.mubr.bf16.mxu0 0
        %572 = vmatmul.mubr.bf16.gmra.mrb[0].mxu0 %v475
        %v573 = vpop.f32.mrb[0].mxu0
        %v574 = vadd.f32 0.0, %v573
        %v575 = vpop.f32.mrb[0].mxu0
        %v576 = vpop.f32.mrb[0].mxu0
        %v577 = vadd.f32 0.0, %v576
        %v578 = vpop.f32.mrb[0].mxu0
        %579 = vmatprep.mubr.bf16.mxu0 0
        %580 = vmatmul.mubr.bf16.gmra.mrb[0].mxu0 %v478
        %v581 = vpop.f32.mrb[0].mxu0
        %v582 = vadd.f32 0.0, %v581
        %v583 = vpop.f32.mrb[0].mxu0
        %v584 = vpop.f32.mrb[0].mxu0
        %v585 = vadd.f32 0.0, %v584
        %v586 = vpop.f32.mrb[0].mxu0
        %587 = vmatprep.mubr.bf16.mxu0 0
        %588 = vmatmul.mubr.bf16.gmra.mrb[0].mxu0 %v481
        %v589 = vpop.f32.mrb[0].mxu0
        %v590 = vadd.f32 0.0, %v589
        %v591 = vpop.f32.mrb[0].mxu0
        %v592 = vpop.f32.mrb[0].mxu0
        %v593 = vadd.f32 0.0, %v592
        %v594 = vpop.f32.mrb[0].mxu0
        %595 = vmatprep.mubr.bf16.mxu0 0
        %596 = vmatmul.mubr.bf16.gmra.mrb[0].mxu0 %v484
        %v597 = vpop.f32.mrb[0].mxu0
        %v598 = vadd.f32 0.0, %v597
        %v599 = vpop.f32.mrb[0].mxu0
        %v600 = vpop.f32.mrb[0].mxu0
        %v601 = vadd.f32 0.0, %v600
        %v602 = vpop.f32.mrb[0].mxu0
        %603 = vmatprep.mubr.bf16.mxu0 0
        %604 = vmatmul.mubr.bf16.gmra.mrb[0].mxu0 %v487
        %v605 = vpop.f32.mrb[0].mxu0
        %v606 = vadd.f32 0.0, %v605
        %v607 = vpop.f32.mrb[0].mxu0
        %v608 = vpop.f32.mrb[0].mxu0
        %v609 = vadd.f32 0.0, %v608
        %v610 = vpop.f32.mrb[0].mxu0
        %611 = vmatprep.mubr.bf16.mxu0 0
        %612 = vmatmul.mubr.bf16.gmra.mrb[0].mxu0 %v490
        %v613 = vpop.f32.mrb[0].mxu0
        %v614 = vadd.f32 0.0, %v613
        %v615 = vpop.f32.mrb[0].mxu0
        %v616 = vpop.f32.mrb[0].mxu0
        %v617 = vadd.f32 0.0, %v616
        %v618 = vpop.f32.mrb[0].mxu0
        %619 = vmatprep.mubr.bf16.mxu0 0
        %620 = vmatmul.mubr.bf16.gmra.mrb[0].mxu0 %v493
        %v621 = vpop.f32.mrb[0].mxu0
        %v622 = vadd.f32 0.0, %v621
        %v623 = vpop.f32.mrb[0].mxu0
        %v624 = vpop.f32.mrb[0].mxu0
        %v625 = vadd.f32 0.0, %v624
        %v626 = vpop.f32.mrb[0].mxu0
        %627 = vmatprep.mubr.bf16.mxu0 0
        %628 = vmatmul.mubr.bf16.gmra.mrb[0].mxu0 %v496
        %v629 = vpop.f32.mrb[0].mxu0
        %v630 = vadd.f32 0.0, %v629
        %v631 = vpop.f32.mrb[0].mxu0
        %v632 = vpop.f32.mrb[0].mxu0
        %v633 = vadd.f32 0.0, %v632
        %v634 = vpop.f32.mrb[0].mxu0
        %635 = vmatprep.mubr.bf16.mxu0 0
        %636 = vmatmul.mubr.bf16.gmra.mrb[0].mxu0 %v499
        %v637 = vpop.f32.mrb[0].mxu0
        %v638 = vadd.f32 0.0, %v637
        %v639 = vpop.f32.mrb[0].mxu0
        %v640 = vpop.f32.mrb[0].mxu0
        %v641 = vadd.f32 0.0, %v640
        %v642 = vpop.f32.mrb[0].mxu0
        %643 = vmatprep.mubr.bf16.mxu0 0
        %644 = vmatmul.mubr.bf16.gmra.mrb[0].mxu0 %v502
        %v645 = vpop.f32.mrb[0].mxu0
        %v646 = vadd.f32 0.0, %v645
        %v647 = vpop.f32.mrb[0].mxu0
        %v648 = vpop.f32.mrb[0].mxu0
        %v649 = vadd.f32 0.0, %v648
        %v650 = vpop.f32.mrb[0].mxu0
        %651 = vmatprep.mubr.bf16.mxu0 0
        %652 = vmatmul.mubr.bf16.gmra.mrb[0].mxu0 %v505
        %v653 = vpop.f32.mrb[0].mxu0
        %v654 = vadd.f32 0.0, %v653
        %v655 = vpop.f32.mrb[0].mxu0
        %v656 = vpop.f32.mrb[0].mxu0
        %v657 = vadd.f32 0.0, %v656
        %v658 = vpop.f32.mrb[0].mxu0
        %659 = vmatprep.mubr.bf16.mxu0 0
        %660 = vmatmul.mubr.bf16.gmra.mrb[0].mxu0 %v508
        %v661 = vpop.f32.mrb[0].mxu0
        %v662 = vadd.f32 0.0, %v661
        %v663 = vpop.f32.mrb[0].mxu0
        %v664 = vpop.f32.mrb[0].mxu0
        %v665 = vadd.f32 0.0, %v664
        %v666 = vpop.f32.mrb[0].mxu0
        %667 = vmatprep.mubr.bf16.mxu0 0
        %668 = vmatmul.mubr.bf16.gmra.mrb[0].mxu0 %v511
        %v669 = vpop.f32.mrb[0].mxu0
        %v670 = vadd.f32 0.0, %v669
        %v671 = vpop.f32.mrb[0].mxu0
        %v672 = vpop.f32.mrb[0].mxu0
        %v673 = vadd.f32 0.0, %v672
        %v674 = vpop.f32.mrb[0].mxu0
        %675 = vmatprep.mubr.bf16.mxu0 0
        %676 = vmatmul.mubr.bf16.gmra.mrb[0].mxu0 %v514
        %v677 = vpop.f32.mrb[0].mxu0
        %v678 = vadd.f32 0.0, %v677
        %v679 = vpop.f32.mrb[0].mxu0
        %v680 = vpop.f32.mrb[0].mxu0
        %v681 = vadd.f32 0.0, %v680
        %v682 = vpop.f32.mrb[0].mxu0
        %683 = vdwg.mxu0
        %v684 = vmax.f32 %v558, %v590
        %v685 = vmax.f32 %v561, %v593
        %v686 = vmax.f32 %v566, %v598
        %v687 = vmax.f32 %v569, %v601
        %v688 = vmax.f32 %v574, %v606
        %v689 = vmax.f32 %v577, %v609
        %v690 = vmax.f32 %v582, %v614
        %v691 = vmax.f32 %v585, %v617
        %v692 = vmax.f32 %v622, %v654
        %v693 = vmax.f32 %v625, %v657
        %v694 = vmax.f32 %v630, %v662
        %v695 = vmax.f32 %v633, %v665
        %v696 = vmax.f32 %v638, %v670
        %v697 = vmax.f32 %v641, %v673
        %v698 = vmax.f32 %v646, %v678
        %v699 = vmax.f32 %v649, %v681
        %v700 = vmax.f32 %v684, %v692
        %v701 = vmax.f32 %v685, %v693
        %v702 = vmax.f32 %v686, %v694
        %v703 = vmax.f32 %v687, %v695
        %v704 = vmax.f32 %v688, %v696
        %v705 = vmax.f32 %v689, %v697
        %v706 = vmax.f32 %v690, %v698
        %v707 = vmax.f32 %v691, %v699
        %v708 = vld [vmem:[%s2] sm:$0x1]
        %v710 = vlaneseq
        %v711 = vshrl.u32 %v710, 7
        %v712 = vsub.s32 0, %v711
        %v713 = vrot.slane %v708, %v712
        %v715 = vadd.f32 %v700, %v713
        %v716 = vadd.f32 %v701, %v713
        %v717 = vadd.f32 %v702, %v713
        %v718 = vadd.f32 %v703, %v713
        %v719 = vadd.f32 %v704, %v713
        %v720 = vadd.f32 %v705, %v713
        %v721 = vadd.f32 %v706, %v713
        %v722 = vadd.f32 %v707, %v713
        %v723 = vmax.f32 %v715, 0.0
        %v724 = vmax.f32 %v716, 0.0
        %v725 = vmax.f32 %v717, 0.0
        %v726 = vmax.f32 %v718, 0.0
        %v727 = vmax.f32 %v719, 0.0
        %v728 = vmax.f32 %v720, 0.0
        %v729 = vmax.f32 %v721, 0.0
        %v730 = vmax.f32 %v722, 0.0
        %v731 = vpack.c.bf16 %v724, %v723
        %v732 = vpack.c.bf16 %v726, %v725
        %v733 = vpack.c.bf16 %v728, %v727
        %v734 = vpack.c.bf16 %v730, %v729
        %v739 = vunpack.c.l.b16 %v731
        %v740 = vunpack.c.h.b16 %v731
        %v741 = vunpack.c.l.b16 %v732
        %v742 = vunpack.c.h.b16 %v732
        %v743 = vunpack.c.l.b16 %v733
        %v744 = vunpack.c.h.b16 %v733
        %v745 = vunpack.c.l.b16 %v734
        %v746 = vunpack.c.h.b16 %v734
        %v747 = vpack.c.b16 %v739, %v739
        %v748 = vpack.c.b16 %v740, %v740
        %v749 = vpack.c.b16 %v741, %v741
        %v750 = vpack.c.b16 %v742, %v742
        %v751 = vpack.c.b16 %v743, %v743
        %v752 = vpack.c.b16 %v744, %v744
        %v753 = vpack.c.b16 %v745, %v745
        %v754 = vpack.c.b16 %v746, %v746
        %763 = vst [vmem:[%s337] sm:$0xf] %v747
        %764 = vst [vmem:[%s337 + $0x4] sm:$0xf] %v748
        %765 = vst [vmem:[%s337 + $0x8] sm:$0xf] %v749
        %766 = vst [vmem:[%s337 + $0xc] sm:$0xf] %v750
        %767 = vst [vmem:[%s337 + $0x10] sm:$0xf] %v751
        %768 = vst [vmem:[%s337 + $0x14] sm:$0xf] %v752
        %769 = vst [vmem:[%s337 + $0x18] sm:$0xf] %v753
        %770 = vst [vmem:[%s337 + $0x1c] sm:$0xf] %v754
        %s771 = smul.u32 8, %s14
        %p772 = scmp.lt.s32.totalorder %s771, 55
        %s773 = scalar_select %p772, %s771, 55
        %s774 = smul.addr %s773, 4
        %s775 = scalar_lea.vmem %s3, %s774
        // Predicated region
        $region74: #{lenet_forward.3} parent=68 // pred_check
          %p776 = pneg %p100
        $region75: #{lenet_forward.3} parent=68 // pred_check_branch
          %778 = sbr.rel (%p776) target = $region77
        $region76: #{lenet_forward.3} parent=68 // pred_region
          %s779 = smul.u32 8, %s14
        $region77: #{lenet_forward.3} parent=68 // pred_fallthru
          _
      $region69: #{lenet_forward.3} parent=5 // pred_fallthru
        _
      %p780 = scmp.le.s32.totalorder 2, %s9
      // Predicated region
      $region78: #{lenet_forward.3} parent=5 // pred_check
        %p781 = pneg %p780
      $region79: #{lenet_forward.3} parent=5 // pred_check_branch
        %783 = sbr.rel (%p781) target = $region81
      $region80: #{lenet_forward.3} parent=5 // pred_region
        %s784 = ssub.s32 %s9, 2
        // Predicated region
        $region82: #{lenet_forward.3} parent=80 // pred_check
          %p785 = pneg %p106
        $region83: #{lenet_forward.3} parent=80 // pred_check_branch
          %787 = sbr.rel (%p785) target = $region85
        $region84: #{lenet_forward.3} parent=80 // pred_region
          %s788 = smul.u32 8, %s15
          %p789 = scmp.lt.s32.totalorder %s788, 55
          %s790 = scalar_select %p789, %s788, 55
          %s791 = smul.addr %s790, 4
          %s792 = scalar_lea.vmem %s3, %s791
        $region85: #{lenet_forward.3} parent=80 // pred_fallthru
          _
      $region81: #{lenet_forward.3} parent=5 // pred_fallthru
        _
    $region6: #{lenet_forward.3} parent=1 // loop_footer
      %s13 = sadd.s32 1, %s9
    $region7: #{lenet_forward.3} parent=1 // loop_footer_branch
      %8 = sbr.rel target = $region3
    $region8: #{lenet_forward.3} parent=1 // loop_exit
      _

// kernel: lenet_forward.4
$region0: #{lenet_forward.4}
  #allocation0 [shape = 'u32[]', space=smem, size = 0x4, offset = 0x4, fixed_abs, tag = 'smem constant byte address 0x4 - core index']
  #allocation1 [shape = 'u32[144,128]{1,0:T(1,128)}', space=vmem, size = 0x12000, scoped, tag = 'internal scratch']
  %s0 = inlined_call_operand.vmem [shape: bf16[4,64,200], index: 0, kind: input, shape index: {}]
  %s1 = inlined_call_operand.vmem [shape: bf16[200,128], index: 1, kind: input, shape index: {}]
  %s2 = inlined_call_operand.vmem [shape: f32[1,128], index: 2, kind: input, shape index: {}]
  %s3 = inlined_call_operand.vmem [shape: bf16[64,128], index: 3, kind: output, shape index: {}]
  %s4 = sld [smem:[#allocation0]]
  $region22: #{lenet_forward.4} parent=0
    _
  %s6 = ssub.s32 1, %s4
  %s7 = scalar_select 0, %s6, %s4
  // Predicated region
  $region2: #{lenet_forward.4} parent=0 // pred_check
    _
  $region3: #{lenet_forward.4} parent=0 // pred_check_branch
    %9 = sbr.rel (0) target = $region5
  $region4: #{lenet_forward.4} parent=0 // pred_region
    _
  $region5: #{lenet_forward.4} parent=0 // pred_fallthru
    _
  // Predicated region
  $region6: #{lenet_forward.4} parent=0 // pred_check
    _
  $region7: #{lenet_forward.4} parent=0 // pred_check_branch
    %11 = sbr.rel (0) target = $region9
  $region8: #{lenet_forward.4} parent=0 // pred_region
    _
  $region9: #{lenet_forward.4} parent=0 // pred_fallthru
    _
  // Predicated region
  $region10: #{lenet_forward.4} parent=0 // pred_check
    _
  $region11: #{lenet_forward.4} parent=0 // pred_check_branch
    %13 = sbr.rel (0) target = $region13
  $region12: #{lenet_forward.4} parent=0 // pred_region
    _
  $region13: #{lenet_forward.4} parent=0 // pred_fallthru
    _
  %v15 = vld [vmem:[%s0] sm:$0xff]
  %v16 = vld [vmem:[%s0 + $0x8] sm:$0xff]
  %v17 = vld [vmem:[%s0 + $0x10] sm:$0xff]
  %v18 = vld [vmem:[%s0 + $0x18] sm:$0xff]
  %v19 = vld [vmem:[%s0 + $0x20] sm:$0xff]
  %v20 = vld [vmem:[%s0 + $0x28] sm:$0xff]
  %v21 = vld [vmem:[%s0 + $0x30] sm:$0xff]
  %v22 = vld [vmem:[%s0 + $0x38] sm:$0xff]
  %v23 = vld [vmem:[%s0 + $0x40] sm:$0xff]
  %v24 = vld [vmem:[%s0 + $0x48] sm:$0xff]
  %v25 = vld [vmem:[%s0 + $0x50] sm:$0xff]
  %v26 = vld [vmem:[%s0 + $0x58] sm:$0xff]
  %v27 = vld [vmem:[%s0 + $0x60] sm:$0xff]
  %v28 = vld [vmem:[%s0 + $0x68] sm:$0xff]
  %v29 = vld [vmem:[%s0 + $0x70] sm:$0xff]
  %v30 = vld [vmem:[%s0 + $0x78] sm:$0xff]
  %v31 = vld [vmem:[%s0 + $0x80] sm:$0xff]
  %v32 = vld [vmem:[%s0 + $0x88] sm:$0xff]
  %v33 = vld [vmem:[%s0 + $0x90] sm:$0xff]
  %v34 = vld [vmem:[%s0 + $0x98] sm:$0xff]
  %v35 = vld [vmem:[%s0 + $0xa0] sm:$0xff]
  %v36 = vld [vmem:[%s0 + $0xa8] sm:$0xff]
  %v37 = vld [vmem:[%s0 + $0xb0] sm:$0xff]
  %v38 = vld [vmem:[%s0 + $0xb8] sm:$0xff]
  %v39 = vld [vmem:[%s0 + $0xc0] sm:$0xff]
  %v40 = vld [vmem:[%s0 + $0xc8] sm:$0xff]
  %v41 = vld [vmem:[%s0 + $0xd0] sm:$0xff]
  %v42 = vld [vmem:[%s0 + $0xd8] sm:$0xff]
  %v43 = vld [vmem:[%s0 + $0xe0] sm:$0xff]
  %v44 = vld [vmem:[%s0 + $0xe8] sm:$0xff]
  %v45 = vld [vmem:[%s0 + $0xf0] sm:$0xff]
  %v46 = vld [vmem:[%s0 + $0xf8] sm:$0xff]
  %v47 = vld [vmem:[%s1] sm:$0xf]
  %v48 = vld [vmem:[%s1 + $0x4] sm:$0xf]
  %v49 = vld [vmem:[%s1 + $0x8] sm:$0xf]
  %v50 = vld [vmem:[%s1 + $0xc] sm:$0xf]
  %v51 = vld [vmem:[%s1 + $0x10] sm:$0xf]
  %v52 = vld [vmem:[%s1 + $0x14] sm:$0xf]
  %v53 = vld [vmem:[%s1 + $0x18] sm:$0xf]
  %v54 = vld [vmem:[%s1 + $0x1c] sm:$0xf]
  %v55 = vld [vmem:[%s1 + $0x20] sm:$0xf]
  %v56 = vld [vmem:[%s1 + $0x24] sm:$0xf]
  %v57 = vld [vmem:[%s1 + $0x28] sm:$0xf]
  %v58 = vld [vmem:[%s1 + $0x2c] sm:$0xf]
  %v59 = vld [vmem:[%s1 + $0x30] sm:$0xf]
  %v60 = vld [vmem:[%s1 + $0x34] sm:$0xf]
  %v61 = vld [vmem:[%s1 + $0x38] sm:$0xf]
  %v62 = vld [vmem:[%s1 + $0x3c] sm:$0xf]
  %v63 = vld [vmem:[%s1 + $0x40] sm:$0xf]
  %v64 = vld [vmem:[%s1 + $0x44] sm:$0xf]
  %v65 = vld [vmem:[%s1 + $0x48] sm:$0xf]
  %v66 = vld [vmem:[%s1 + $0x4c] sm:$0xf]
  %v67 = vld [vmem:[%s1 + $0x50] sm:$0xf]
  %v68 = vld [vmem:[%s1 + $0x54] sm:$0xf]
  %v69 = vld [vmem:[%s1 + $0x58] sm:$0xf]
  %v70 = vld [vmem:[%s1 + $0x5c] sm:$0xf]
  %v71 = vld [vmem:[%s1 + $0x60] sm:$0xf]
  %v104 = vunpack.c.l.b16 %v15
  %v105 = vunpack.c.h.b16 %v15
  %v106 = vunpack.c.l.b16 %v16
  %v107 = vunpack.c.h.b16 %v16
  %v108 = vunpack.c.l.b16 %v17
  %v109 = vunpack.c.h.b16 %v17
  %v110 = vunpack.c.l.b16 %v18
  %v111 = vunpack.c.h.b16 %v18
  %v112 = vunpack.c.l.b16 %v19
  %v113 = vunpack.c.h.b16 %v19
  %v114 = vunpack.c.l.b16 %v20
  %v115 = vunpack.c.h.b16 %v20
  %v116 = vunpack.c.l.b16 %v21
  %v117 = vunpack.c.h.b16 %v21
  %v118 = vunpack.c.l.b16 %v22
  %v119 = vunpack.c.h.b16 %v22
  %v120 = vunpack.c.l.b16 %v23
  %v121 = vunpack.c.h.b16 %v23
  %v122 = vunpack.c.l.b16 %v24
  %v123 = vunpack.c.h.b16 %v24
  %v124 = vunpack.c.l.b16 %v25
  %v125 = vunpack.c.h.b16 %v25
  %v126 = vunpack.c.l.b16 %v26
  %v127 = vunpack.c.h.b16 %v26
  %v128 = vunpack.c.l.b16 %v27
  %v129 = vunpack.c.h.b16 %v27
  %v130 = vunpack.c.l.b16 %v28
  %v131 = vunpack.c.h.b16 %v28
  %v132 = vunpack.c.l.b16 %v29
  %v133 = vunpack.c.h.b16 %v29
  %v134 = vunpack.c.l.b16 %v30
  %v135 = vunpack.c.h.b16 %v30
  %v136 = vunpack.c.l.b16 %v31
  %v137 = vunpack.c.h.b16 %v31
  %v138 = vunpack.c.l.b16 %v32
  %v139 = vunpack.c.h.b16 %v32
  %v140 = vunpack.c.l.b16 %v33
  %v141 = vunpack.c.h.b16 %v33
  %v142 = vunpack.c.l.b16 %v34
  %v143 = vunpack.c.h.b16 %v34
  %v144 = vunpack.c.l.b16 %v35
  %v145 = vunpack.c.h.b16 %v35
  %v146 = vunpack.c.l.b16 %v36
  %v147 = vunpack.c.h.b16 %v36
  %v148 = vunpack.c.l.b16 %v37
  %v149 = vunpack.c.h.b16 %v37
  %v150 = vunpack.c.l.b16 %v38
  %v151 = vunpack.c.h.b16 %v38
  %v152 = vunpack.c.l.b16 %v39
  %v153 = vunpack.c.h.b16 %v39
  %v154 = vunpack.c.l.b16 %v40
  %v155 = vunpack.c.h.b16 %v40
  %v156 = vunpack.c.l.b16 %v41
  %v157 = vunpack.c.h.b16 %v41
  %v158 = vunpack.c.l.b16 %v42
  %v159 = vunpack.c.h.b16 %v42
  %v160 = vunpack.c.l.b16 %v43
  %v161 = vunpack.c.h.b16 %v43
  %v162 = vunpack.c.l.b16 %v44
  %v163 = vunpack.c.h.b16 %v44
  %v164 = vunpack.c.l.b16 %v45
  %v165 = vunpack.c.h.b16 %v45
  %v166 = vunpack.c.l.b16 %v46
  %v167 = vunpack.c.h.b16 %v46
  %v168 = vpack.c.b16 %v106, %v104
  %v169 = vpack.c.b16 %v107, %v105
  %v170 = vpack.c.b16 %v110, %v108
  %v171 = vpack.c.b16 %v111, %v109
  %v172 = vpack.c.b16 %v114, %v112
  %v173 = vpack.c.b16 %v115, %v113
  %v174 = vpack.c.b16 %v118, %v116
  %v175 = vpack.c.b16 %v119, %v117
  %v176 = vpack.c.b16 %v122, %v120
  %v177 = vpack.c.b16 %v123, %v121
  %v178 = vpack.c.b16 %v126, %v124
  %v179 = vpack.c.b16 %v127, %v125
  %v180 = vpack.c.b16 %v130, %v128
  %v181 = vpack.c.b16 %v131, %v129
  %v182 = vpack.c.b16 %v134, %v132
  %v183 = vpack.c.b16 %v135, %v133
  %v184 = vpack.c.b16 %v138, %v136
  %v185 = vpack.c.b16 %v139, %v137
  %v186 = vpack.c.b16 %v142, %v140
  %v187 = vpack.c.b16 %v143, %v141
  %v188 = vpack.c.b16 %v146, %v144
  %v189 = vpack.c.b16 %v147, %v145
  %v190 = vpack.c.b16 %v150, %v148
  %v191 = vpack.c.b16 %v151, %v149
  %v192 = vpack.c.b16 %v154, %v152
  %v193 = vpack.c.b16 %v155, %v153
  %v194 = vpack.c.b16 %v158, %v156
  %v195 = vpack.c.b16 %v159, %v157
  %v196 = vpack.c.b16 %v162, %v160
  %v197 = vpack.c.b16 %v163, %v161
  %v198 = vpack.c.b16 %v166, %v164
  %v199 = vpack.c.b16 %v167, %v165
  %v241 = vunpack.c.l.b16 %v47
  %v242 = vunpack.c.l.b16 %v48
  %v243 = vunpack.c.l.b16 %v49
  %v244 = vunpack.c.l.b16 %v50
  %v245 = vunpack.c.l.b16 %v51
  %v246 = vunpack.c.l.b16 %v52
  %v247 = vunpack.c.l.b16 %v53
  %v248 = vunpack.c.l.b16 %v54
  %v249 = vunpack.c.l.b16 %v55
  %v250 = vunpack.c.l.b16 %v56
  %v251 = vunpack.c.l.b16 %v57
  %v252 = vunpack.c.l.b16 %v58
  %v253 = vunpack.c.l.b16 %v59
  %v254 = vunpack.c.l.b16 %v60
  %v255 = vunpack.c.l.b16 %v61
  %v256 = vunpack.c.l.b16 %v62
  %v257 = vunpack.c.l.b16 %v63
  %v258 = vunpack.c.l.b16 %v64
  %v259 = vunpack.c.l.b16 %v65
  %v260 = vunpack.c.l.b16 %v66
  %v261 = vunpack.c.l.b16 %v67
  %v262 = vunpack.c.l.b16 %v68
  %v263 = vunpack.c.l.b16 %v69
  %v264 = vunpack.c.l.b16 %v70
  %v265 = vunpack.c.l.b16 %v71
  %v266 = vpack.c.b16 %v242, %v241
  %v267 = vpack.c.b16 %v244, %v243
  %v268 = vpack.c.b16 %v246, %v245
  %v269 = vpack.c.b16 %v248, %v247
  %v270 = vpack.c.b16 %v250, %v249
  %v271 = vpack.c.b16 %v252, %v251
  %v272 = vpack.c.b16 %v254, %v253
  %v273 = vpack.c.b16 %v256, %v255
  %v274 = vpack.c.b16 %v258, %v257
  %v275 = vpack.c.b16 %v260, %v259
  %v276 = vpack.c.b16 %v262, %v261
  %v277 = vpack.c.b16 %v264, %v263
  %v278 = vpack.c.b16 %v265, %v265
  %vm291 = vcmask 588800
  %v293 = vsel %vm291, %v169, 0
  %v296 = vsel %vm291, %v171, 0
  %v299 = vsel %vm291, %v173, 0
  %v302 = vsel %vm291, %v175, 0
  %v305 = vsel %vm291, %v177, 0
  %v308 = vsel %vm291, %v179, 0
  %v311 = vsel %vm291, %v181, 0
  %v314 = vsel %vm291, %v183, 0
  %v317 = vsel %vm291, %v185, 0
  %v320 = vsel %vm291, %v187, 0
  %v323 = vsel %vm291, %v189, 0
  %v326 = vsel %vm291, %v191, 0
  %v329 = vsel %vm291, %v193, 0
  %v332 = vsel %vm291, %v195, 0
  %v335 = vsel %vm291, %v197, 0
  %v338 = vsel %vm291, %v199, 0
  %vm340 = vcmask 1043456
  %v342 = vsel %vm340, %v278, 0
  %344 = vmatprep.subr.bf16.mxu0 0
  %345 = vmatpush1.bf16.msra.mxu0 %v266
  %346 = vmatprep.subr.bf16.mxu0 0
  %347 = vmatpush1.bf16.msra.mxu0 %v267
  %348 = vmatprep.subr.bf16.mxu0 0
  %349 = vmatpush1.bf16.msra.mxu0 %v268
  %350 = vmatprep.subr.bf16.mxu0 0
  %351 = vmatpush1.bf16.msra.mxu0 %v269
  %352 = vmatprep.subr.bf16.mxu0 0
  %353 = vmatpush1.bf16.msra.mxu0 %v270
  %354 = vmatprep.subr.bf16.mxu0 0
  %355 = vmatpush1.bf16.msra.mxu0 %v271
  %356 = vmatprep.subr.bf16.mxu0 0
  %357 = vmatpush1.bf16.msra.mxu0 %v272
  %358 = vmatprep.subr.bf16.mxu0 0
  %359 = vmatpush1.bf16.msra.mxu0 %v273
  %360 = vmatprep.subr.bf16.mxu0 0
  %361 = vmatpush1.bf16.msra.mxu0 %v274
  %362 = vmatprep.subr.bf16.mxu0 0
  %363 = vmatpush1.bf16.msra.mxu0 %v275
  %364 = vmatprep.subr.bf16.mxu0 0
  %365 = vmatpush1.bf16.msra.mxu0 %v276
  %366 = vmatprep.subr.bf16.mxu0 0
  %367 = vmatpush1.bf16.msra.mxu0 %v277
  %368 = vmatprep.subr.bf16.mxu0 0
  %369 = vmatpush1.bf16.msra.mxu0 %v342
  %370 = vmatprep.subr.bf16.mxu0 0
  %371 = vmatpush1.bf16.msra.mxu0 0
  %372 = vmatprep.subr.bf16.mxu0 0
  %373 = vmatpush1.bf16.msra.mxu0 0
  %374 = vmatprep.subr.bf16.mxu0 0
  %375 = vmatpush1.bf16.msra.mxu0 0
  %376 = vmatprep.mubr.bf16.mxu0 %v293
  %377 = vmatmul.mubr.bf16.gmra.mrb[0].mxu0 %v168
  %v378 = vpop.f32.mrb[0].mxu0
  %v379 = vadd.f32 0.0, %v378
  %v380 = vpop.f32.mrb[0].mxu0
  %v381 = vpop.f32.mrb[0].mxu0
  %v382 = vadd.f32 0.0, %v381
  %v383 = vpop.f32.mrb[0].mxu0
  %384 = vmatprep.mubr.bf16.mxu0 %v296
  %385 = vmatmul.mubr.bf16.gmra.mrb[0].mxu0 %v170
  %v386 = vpop.f32.mrb[0].mxu0
  %v387 = vadd.f32 0.0, %v386
  %v388 = vpop.f32.mrb[0].mxu0
  %v389 = vpop.f32.mrb[0].mxu0
  %v390 = vadd.f32 0.0, %v389
  %v391 = vpop.f32.mrb[0].mxu0
  %392 = vmatprep.mubr.bf16.mxu0 %v299
  %393 = vmatmul.mubr.bf16.gmra.mrb[0].mxu0 %v172
  %v394 = vpop.f32.mrb[0].mxu0
  %v395 = vadd.f32 0.0, %v394
  %v396 = vpop.f32.mrb[0].mxu0
  %v397 = vpop.f32.mrb[0].mxu0
  %v398 = vadd.f32 0.0, %v397
  %v399 = vpop.f32.mrb[0].mxu0
  %400 = vmatprep.mubr.bf16.mxu0 %v302
  %401 = vmatmul.mubr.bf16.gmra.mrb[0].mxu0 %v174
  %v402 = vpop.f32.mrb[0].mxu0
  %v403 = vadd.f32 0.0, %v402
  %v404 = vpop.f32.mrb[0].mxu0
  %v405 = vpop.f32.mrb[0].mxu0
  %v406 = vadd.f32 0.0, %v405
  %v407 = vpop.f32.mrb[0].mxu0
  %408 = vmatprep.mubr.bf16.mxu0 %v305
  %409 = vmatmul.mubr.bf16.gmra.mrb[0].mxu0 %v176
  %v410 = vpop.f32.mrb[0].mxu0
  %v411 = vadd.f32 0.0, %v410
  %v412 = vpop.f32.mrb[0].mxu0
  %v413 = vpop.f32.mrb[0].mxu0
  %v414 = vadd.f32 0.0, %v413
  %v415 = vpop.f32.mrb[0].mxu0
  %416 = vmatprep.mubr.bf16.mxu0 %v308
  %417 = vmatmul.mubr.bf16.gmra.mrb[0].mxu0 %v178
  %v418 = vpop.f32.mrb[0].mxu0
  %v419 = vadd.f32 0.0, %v418
  %v420 = vpop.f32.mrb[0].mxu0
  %v421 = vpop.f32.mrb[0].mxu0
  %v422 = vadd.f32 0.0, %v421
  %v423 = vpop.f32.mrb[0].mxu0
  %424 = vmatprep.mubr.bf16.mxu0 %v311
  %425 = vmatmul.mubr.bf16.gmra.mrb[0].mxu0 %v180
  %v426 = vpop.f32.mrb[0].mxu0
  %v427 = vadd.f32 0.0, %v426
  %v428 = vpop.f32.mrb[0].mxu0
  %v429 = vpop.f32.mrb[0].mxu0
  %v430 = vadd.f32 0.0, %v429
  %v431 = vpop.f32.mrb[0].mxu0
  %432 = vmatprep.mubr.bf16.mxu0 %v314
  %433 = vmatmul.mubr.bf16.gmra.mrb[0].mxu0 %v182
  %v434 = vpop.f32.mrb[0].mxu0
  %v435 = vadd.f32 0.0, %v434
  %v436 = vpop.f32.mrb[0].mxu0
  %v437 = vpop.f32.mrb[0].mxu0
  %v438 = vadd.f32 0.0, %v437
  %v439 = vpop.f32.mrb[0].mxu0
  %440 = vmatprep.mubr.bf16.mxu0 %v317
  %441 = vmatmul.mubr.bf16.gmra.mrb[0].mxu0 %v184
  %v442 = vpop.f32.mrb[0].mxu0
  %v443 = vadd.f32 0.0, %v442
  %v444 = vpop.f32.mrb[0].mxu0
  %v445 = vpop.f32.mrb[0].mxu0
  %v446 = vadd.f32 0.0, %v445
  %v447 = vpop.f32.mrb[0].mxu0
  %448 = vmatprep.mubr.bf16.mxu0 %v320
  %449 = vmatmul.mubr.bf16.gmra.mrb[0].mxu0 %v186
  %v450 = vpop.f32.mrb[0].mxu0
  %v451 = vadd.f32 0.0, %v450
  %v452 = vpop.f32.mrb[0].mxu0
  %v453 = vpop.f32.mrb[0].mxu0
  %v454 = vadd.f32 0.0, %v453
  %v455 = vpop.f32.mrb[0].mxu0
  %456 = vmatprep.mubr.bf16.mxu0 %v323
  %457 = vmatmul.mubr.bf16.gmra.mrb[0].mxu0 %v188
  %v458 = vpop.f32.mrb[0].mxu0
  %v459 = vadd.f32 0.0, %v458
  %v460 = vpop.f32.mrb[0].mxu0
  %v461 = vpop.f32.mrb[0].mxu0
  %v462 = vadd.f32 0.0, %v461
  %v463 = vpop.f32.mrb[0].mxu0
  %464 = vmatprep.mubr.bf16.mxu0 %v326
  %465 = vmatmul.mubr.bf16.gmra.mrb[0].mxu0 %v190
  %v466 = vpop.f32.mrb[0].mxu0
  %v467 = vadd.f32 0.0, %v466
  %v468 = vpop.f32.mrb[0].mxu0
  %v469 = vpop.f32.mrb[0].mxu0
  %v470 = vadd.f32 0.0, %v469
  %v471 = vpop.f32.mrb[0].mxu0
  %472 = vmatprep.mubr.bf16.mxu0 %v329
  %473 = vmatmul.mubr.bf16.gmra.mrb[0].mxu0 %v192
  %v474 = vpop.f32.mrb[0].mxu0
  %v475 = vadd.f32 0.0, %v474
  %v476 = vpop.f32.mrb[0].mxu0
  %v477 = vpop.f32.mrb[0].mxu0
  %v478 = vadd.f32 0.0, %v477
  %v479 = vpop.f32.mrb[0].mxu0
  %480 = vmatprep.mubr.bf16.mxu0 %v332
  %481 = vmatmul.mubr.bf16.gmra.mrb[0].mxu0 %v194
  %v482 = vpop.f32.mrb[0].mxu0
  %v483 = vadd.f32 0.0, %v482
  %v484 = vpop.f32.mrb[0].mxu0
  %v485 = vpop.f32.mrb[0].mxu0
  %v486 = vadd.f32 0.0, %v485
  %v487 = vpop.f32.mrb[0].mxu0
  %488 = vmatprep.mubr.bf16.mxu0 %v335
  %489 = vmatmul.mubr.bf16.gmra.mrb[0].mxu0 %v196
  %v490 = vpop.f32.mrb[0].mxu0
  %v491 = vadd.f32 0.0, %v490
  %v492 = vpop.f32.mrb[0].mxu0
  %v493 = vpop.f32.mrb[0].mxu0
  %v494 = vadd.f32 0.0, %v493
  %v495 = vpop.f32.mrb[0].mxu0
  %496 = vmatprep.mubr.bf16.mxu0 %v338
  %497 = vmatmul.mubr.bf16.gmra.mrb[0].mxu0 %v198
  %v498 = vpop.f32.mrb[0].mxu0
  %v499 = vadd.f32 0.0, %v498
  %v500 = vpop.f32.mrb[0].mxu0
  %v501 = vpop.f32.mrb[0].mxu0
  %v502 = vadd.f32 0.0, %v501
  %v503 = vpop.f32.mrb[0].mxu0
  %504 = vdwg.mxu0
  %v505 = vmax.f32 %v379, %v411
  %v506 = vmax.f32 %v382, %v414
  %v507 = vmax.f32 %v387, %v419
  %v508 = vmax.f32 %v390, %v422
  %v509 = vmax.f32 %v395, %v427
  %v510 = vmax.f32 %v398, %v430
  %v511 = vmax.f32 %v403, %v435
  %v512 = vmax.f32 %v406, %v438
  %v513 = vmax.f32 %v443, %v475
  %v514 = vmax.f32 %v446, %v478
  %v515 = vmax.f32 %v451, %v483
  %v516 = vmax.f32 %v454, %v486
  %v517 = vmax.f32 %v459, %v491
  %v518 = vmax.f32 %v462, %v494
  %v519 = vmax.f32 %v467, %v499
  %v520 = vmax.f32 %v470, %v502
  %v521 = vmax.f32 %v505, %v513
  %v522 = vmax.f32 %v506, %v514
  %v523 = vmax.f32 %v507, %v515
  %v524 = vmax.f32 %v508, %v516
  %v525 = vmax.f32 %v509, %v517
  %v526 = vmax.f32 %v510, %v518
  %v527 = vmax.f32 %v511, %v519
  %v528 = vmax.f32 %v512, %v520
  %v529 = vld [vmem:[%s2] sm:$0x1]
  %v531 = vlaneseq
  %v532 = vshrl.u32 %v531, 7
  %v533 = vsub.s32 0, %v532
  %v534 = vrot.slane %v529, %v533
  %v536 = vadd.f32 %v521, %v534
  %v537 = vadd.f32 %v522, %v534
  %v538 = vadd.f32 %v523, %v534
  %v539 = vadd.f32 %v524, %v534
  %v540 = vadd.f32 %v525, %v534
  %v541 = vadd.f32 %v526, %v534
  %v542 = vadd.f32 %v527, %v534
  %v543 = vadd.f32 %v528, %v534
  %v544 = vmax.f32 %v536, 0.0
  %v545 = vmax.f32 %v537, 0.0
  %v546 = vmax.f32 %v538, 0.0
  %v547 = vmax.f32 %v539, 0.0
  %v548 = vmax.f32 %v540, 0.0
  %v549 = vmax.f32 %v541, 0.0
  %v550 = vmax.f32 %v542, 0.0
  %v551 = vmax.f32 %v543, 0.0
  %v552 = vpack.c.bf16 %v545, %v544
  %v553 = vpack.c.bf16 %v547, %v546
  %v554 = vpack.c.bf16 %v549, %v548
  %v555 = vpack.c.bf16 %v551, %v550
  %v560 = vunpack.c.l.b16 %v552
  %v561 = vunpack.c.h.b16 %v552
  %v562 = vunpack.c.l.b16 %v553
  %v563 = vunpack.c.h.b16 %v553
  %v564 = vunpack.c.l.b16 %v554
  %v565 = vunpack.c.h.b16 %v554
  %v566 = vunpack.c.l.b16 %v555
  %v567 = vunpack.c.h.b16 %v555
  %v568 = vpack.c.b16 %v560, %v560
  %v569 = vpack.c.b16 %v561, %v561
  %v570 = vpack.c.b16 %v562, %v562
  %v571 = vpack.c.b16 %v563, %v563
  %v572 = vpack.c.b16 %v564, %v564
  %v573 = vpack.c.b16 %v565, %v565
  %v574 = vpack.c.b16 %v566, %v566
  %v575 = vpack.c.b16 %v567, %v567
  %584 = vst [vmem:[%s3] sm:$0xf] %v568
  %585 = vst [vmem:[%s3 + $0x4] sm:$0xf] %v569
  %586 = vst [vmem:[%s3 + $0x8] sm:$0xf] %v570
  %587 = vst [vmem:[%s3 + $0xc] sm:$0xf] %v571
  %588 = vst [vmem:[%s3 + $0x10] sm:$0xf] %v572
  %589 = vst [vmem:[%s3 + $0x14] sm:$0xf] %v573
  %590 = vst [vmem:[%s3 + $0x18] sm:$0xf] %v574
  %591 = vst [vmem:[%s3 + $0x1c] sm:$0xf] %v575
  // Predicated region
  $region14: #{lenet_forward.4} parent=0 // pred_check
    _
  $region15: #{lenet_forward.4} parent=0 // pred_check_branch
    %593 = sbr.rel (0) target = $region17
  $region16: #{lenet_forward.4} parent=0 // pred_region
    _
  $region17: #{lenet_forward.4} parent=0 // pred_fallthru
    _
  // Predicated region
  $region18: #{lenet_forward.4} parent=0 // pred_check
    _
  $region19: #{lenet_forward.4} parent=0 // pred_check_branch
    %595 = sbr.rel (0) target = $region21
  $region20: #{lenet_forward.4} parent=0 // pred_region
    _
  $region21: #{lenet_forward.4} parent=0 // pred_fallthru
    _

// kernel: lenet_forward.5
$region0: #{lenet_forward.5}
  #allocation0 [shape = 'u32[]', space=smem, size = 0x4, offset = 0x4, fixed_abs, tag = 'smem constant byte address 0x4 - core index']
  #allocation1 [shape = 'u32[144,128]{1,0:T(1,128)}', space=vmem, size = 0x12000, scoped, tag = 'internal scratch']
  %s0 = inlined_call_operand.vmem [shape: bf16[16,400], index: 0, kind: input, shape index: {}]
  %s1 = inlined_call_operand.vmem [shape: bf16[400,128], index: 1, kind: input, shape index: {}]
  %s2 = inlined_call_operand.vmem [shape: f32[1,128], index: 2, kind: input, shape index: {}]
  %s3 = inlined_call_operand.vmem [shape: bf16[128,128], index: 3, kind: input, shape index: {}]
  %s4 = inlined_call_operand.vmem [shape: f32[1,128], index: 4, kind: input, shape index: {}]
  %s5 = inlined_call_operand.vmem [shape: bf16[128,128], index: 5, kind: input, shape index: {}]
  %s6 = inlined_call_operand.vmem [shape: f32[1,128], index: 6, kind: input, shape index: {}]
  %s7 = inlined_call_operand.vmem [shape: f32[16,128], index: 7, kind: output, shape index: {}]
  %s8 = sld [smem:[#allocation0]]
  $region38: #{lenet_forward.5} parent=0
    _
  %s10 = ssub.s32 1, %s8
  %s11 = scalar_select 0, %s10, %s8
  // Predicated region
  $region2: #{lenet_forward.5} parent=0 // pred_check
    _
  $region3: #{lenet_forward.5} parent=0 // pred_check_branch
    %13 = sbr.rel (0) target = $region5
  $region4: #{lenet_forward.5} parent=0 // pred_region
    _
  $region5: #{lenet_forward.5} parent=0 // pred_fallthru
    _
  // Predicated region
  $region6: #{lenet_forward.5} parent=0 // pred_check
    _
  $region7: #{lenet_forward.5} parent=0 // pred_check_branch
    %15 = sbr.rel (0) target = $region9
  $region8: #{lenet_forward.5} parent=0 // pred_region
    _
  $region9: #{lenet_forward.5} parent=0 // pred_fallthru
    _
  // Predicated region
  $region10: #{lenet_forward.5} parent=0 // pred_check
    _
  $region11: #{lenet_forward.5} parent=0 // pred_check_branch
    %17 = sbr.rel (0) target = $region13
  $region12: #{lenet_forward.5} parent=0 // pred_region
    _
  $region13: #{lenet_forward.5} parent=0 // pred_fallthru
    _
  // Predicated region
  $region14: #{lenet_forward.5} parent=0 // pred_check
    _
  $region15: #{lenet_forward.5} parent=0 // pred_check_branch
    %19 = sbr.rel (0) target = $region17
  $region16: #{lenet_forward.5} parent=0 // pred_region
    _
  $region17: #{lenet_forward.5} parent=0 // pred_fallthru
    _
  // Predicated region
  $region18: #{lenet_forward.5} parent=0 // pred_check
    _
  $region19: #{lenet_forward.5} parent=0 // pred_check_branch
    %21 = sbr.rel (0) target = $region21
  $region20: #{lenet_forward.5} parent=0 // pred_region
    _
  $region21: #{lenet_forward.5} parent=0 // pred_fallthru
    _
  // Predicated region
  $region22: #{lenet_forward.5} parent=0 // pred_check
    _
  $region23: #{lenet_forward.5} parent=0 // pred_check_branch
    %23 = sbr.rel (0) target = $region25
  $region24: #{lenet_forward.5} parent=0 // pred_region
    _
  $region25: #{lenet_forward.5} parent=0 // pred_fallthru
    _
  // Predicated region
  $region26: #{lenet_forward.5} parent=0 // pred_check
    _
  $region27: #{lenet_forward.5} parent=0 // pred_check_branch
    %25 = sbr.rel (0) target = $region29
  $region28: #{lenet_forward.5} parent=0 // pred_region
    _
  $region29: #{lenet_forward.5} parent=0 // pred_fallthru
    _
  %v27 = vld [vmem:[%s0] sm:$0xff]
  %v28 = vld [vmem:[%s0 + $0x8] sm:$0xff]
  %v29 = vld [vmem:[%s0 + $0x10] sm:$0xff]
  %v30 = vld [vmem:[%s0 + $0x18] sm:$0xff]
  %v31 = vld [vmem:[%s1] sm:$0xf]
  %v32 = vld [vmem:[%s1 + $0x4] sm:$0xf]
  %v33 = vld [vmem:[%s1 + $0x8] sm:$0xf]
  %v34 = vld [vmem:[%s1 + $0xc] sm:$0xf]
  %v35 = vld [vmem:[%s1 + $0x10] sm:$0xf]
  %v36 = vld [vmem:[%s1 + $0x14] sm:$0xf]
  %v37 = vld [vmem:[%s1 + $0x18] sm:$0xf]
  %v38 = vld [vmem:[%s1 + $0x1c] sm:$0xf]
  %v39 = vld [vmem:[%s1 + $0x20] sm:$0xf]
  %v40 = vld [vmem:[%s1 + $0x24] sm:$0xf]
  %v41 = vld [vmem:[%s1 + $0x28] sm:$0xf]
  %v42 = vld [vmem:[%s1 + $0x2c] sm:$0xf]
  %v43 = vld [vmem:[%s1 + $0x30] sm:$0xf]
  %v44 = vld [vmem:[%s1 + $0x34] sm:$0xf]
  %v45 = vld [vmem:[%s1 + $0x38] sm:$0xf]
  %v46 = vld [vmem:[%s1 + $0x3c] sm:$0xf]
  %v47 = vld [vmem:[%s1 + $0x40] sm:$0xf]
  %v48 = vld [vmem:[%s1 + $0x44] sm:$0xf]
  %v49 = vld [vmem:[%s1 + $0x48] sm:$0xf]
  %v50 = vld [vmem:[%s1 + $0x4c] sm:$0xf]
  %v51 = vld [vmem:[%s1 + $0x50] sm:$0xf]
  %v52 = vld [vmem:[%s1 + $0x54] sm:$0xf]
  %v53 = vld [vmem:[%s1 + $0x58] sm:$0xf]
  %v54 = vld [vmem:[%s1 + $0x5c] sm:$0xf]
  %v55 = vld [vmem:[%s1 + $0x60] sm:$0xf]
  %v56 = vld [vmem:[%s1 + $0x64] sm:$0xf]
  %v57 = vld [vmem:[%s1 + $0x68] sm:$0xf]
  %v58 = vld [vmem:[%s1 + $0x6c] sm:$0xf]
  %v59 = vld [vmem:[%s1 + $0x70] sm:$0xf]
  %v60 = vld [vmem:[%s1 + $0x74] sm:$0xf]
  %v61 = vld [vmem:[%s1 + $0x78] sm:$0xf]
  %v62 = vld [vmem:[%s1 + $0x7c] sm:$0xf]
  %v63 = vld [vmem:[%s1 + $0x80] sm:$0xf]
  %v64 = vld [vmem:[%s1 + $0x84] sm:$0xf]
  %v65 = vld [vmem:[%s1 + $0x88] sm:$0xf]
  %v66 = vld [vmem:[%s1 + $0x8c] sm:$0xf]
  %v67 = vld [vmem:[%s1 + $0x90] sm:$0xf]
  %v68 = vld [vmem:[%s1 + $0x94] sm:$0xf]
  %v69 = vld [vmem:[%s1 + $0x98] sm:$0xf]
  %v70 = vld [vmem:[%s1 + $0x9c] sm:$0xf]
  %v71 = vld [vmem:[%s1 + $0xa0] sm:$0xf]
  %v72 = vld [vmem:[%s1 + $0xa4] sm:$0xf]
  %v73 = vld [vmem:[%s1 + $0xa8] sm:$0xf]
  %v74 = vld [vmem:[%s1 + $0xac] sm:$0xf]
  %v75 = vld [vmem:[%s1 + $0xb0] sm:$0xf]
  %v76 = vld [vmem:[%s1 + $0xb4] sm:$0xf]
  %v77 = vld [vmem:[%s1 + $0xb8] sm:$0xf]
  %v78 = vld [vmem:[%s1 + $0xbc] sm:$0xf]
  %v79 = vld [vmem:[%s1 + $0xc0] sm:$0xf]
  %v80 = vld [vmem:[%s1 + $0xc4] sm:$0xf]
  %v81 = vld [vmem:[%s2] sm:$0x1]
  %v83 = vlaneseq
  %v84 = vshrl.u32 %v83, 7
  %v85 = vsub.s32 0, %v84
  %v86 = vrot.slane %v81, %v85
  %v92 = vunpack.c.l.b16 %v27
  %v93 = vunpack.c.h.b16 %v27
  %v94 = vunpack.c.l.b16 %v28
  %v95 = vunpack.c.h.b16 %v28
  %v96 = vunpack.c.l.b16 %v29
  %v97 = vunpack.c.h.b16 %v29
  %v98 = vunpack.c.l.b16 %v30
  %v99 = vunpack.c.h.b16 %v30
  %v100 = vpack.c.b16 %v96, %v92
  %v101 = vpack.c.b16 %v97, %v93
  %v102 = vpack.c.b16 %v98, %v94
  %v103 = vpack.c.b16 %v99, %v95
  %v157 = vunpack.c.l.b16 %v31
  %v158 = vunpack.c.l.b16 %v32
  %v159 = vunpack.c.l.b16 %v33
  %v160 = vunpack.c.l.b16 %v34
  %v161 = vunpack.c.l.b16 %v35
  %v162 = vunpack.c.l.b16 %v36
  %v163 = vunpack.c.l.b16 %v37
  %v164 = vunpack.c.l.b16 %v38
  %v165 = vunpack.c.l.b16 %v39
  %v166 = vunpack.c.l.b16 %v40
  %v167 = vunpack.c.l.b16 %v41
  %v168 = vunpack.c.l.b16 %v42
  %v169 = vunpack.c.l.b16 %v43
  %v170 = vunpack.c.l.b16 %v44
  %v171 = vunpack.c.l.b16 %v45
  %v172 = vunpack.c.l.b16 %v46
  %v173 = vunpack.c.l.b16 %v47
  %v174 = vunpack.c.l.b16 %v48
  %v175 = vunpack.c.l.b16 %v49
  %v176 = vunpack.c.l.b16 %v50
  %v177 = vunpack.c.l.b16 %v51
  %v178 = vunpack.c.l.b16 %v52
  %v179 = vunpack.c.l.b16 %v53
  %v180 = vunpack.c.l.b16 %v54
  %v181 = vunpack.c.l.b16 %v55
  %v182 = vunpack.c.l.b16 %v56
  %v183 = vunpack.c.l.b16 %v57
  %v184 = vunpack.c.l.b16 %v58
  %v185 = vunpack.c.l.b16 %v59
  %v186 = vunpack.c.l.b16 %v60
  %v187 = vunpack.c.l.b16 %v61
  %v188 = vunpack.c.l.b16 %v62
  %v189 = vunpack.c.l.b16 %v63
  %v190 = vunpack.c.l.b16 %v64
  %v191 = vunpack.c.l.b16 %v65
  %v192 = vunpack.c.l.b16 %v66
  %v193 = vunpack.c.l.b16 %v67
  %v194 = vunpack.c.l.b16 %v68
  %v195 = vunpack.c.l.b16 %v69
  %v196 = vunpack.c.l.b16 %v70
  %v197 = vunpack.c.l.b16 %v71
  %v198 = vunpack.c.l.b16 %v72
  %v199 = vunpack.c.l.b16 %v73
  %v200 = vunpack.c.l.b16 %v74
  %v201 = vunpack.c.l.b16 %v75
  %v202 = vunpack.c.l.b16 %v76
  %v203 = vunpack.c.l.b16 %v77
  %v204 = vunpack.c.l.b16 %v78
  %v205 = vunpack.c.l.b16 %v79
  %v206 = vunpack.c.l.b16 %v80
  %v207 = vpack.c.b16 %v158, %v157
  %v208 = vpack.c.b16 %v160, %v159
  %v209 = vpack.c.b16 %v162, %v161
  %v210 = vpack.c.b16 %v164, %v163
  %v211 = vpack.c.b16 %v166, %v165
  %v212 = vpack.c.b16 %v168, %v167
  %v213 = vpack.c.b16 %v170, %v169
  %v214 = vpack.c.b16 %v172, %v171
  %v215 = vpack.c.b16 %v174, %v173
  %v216 = vpack.c.b16 %v176, %v175
  %v217 = vpack.c.b16 %v178, %v177
  %v218 = vpack.c.b16 %v180, %v179
  %v219 = vpack.c.b16 %v182, %v181
  %v220 = vpack.c.b16 %v184, %v183
  %v221 = vpack.c.b16 %v186, %v185
  %v222 = vpack.c.b16 %v188, %v187
  %v223 = vpack.c.b16 %v190, %v189
  %v224 = vpack.c.b16 %v192, %v191
  %v225 = vpack.c.b16 %v194, %v193
  %v226 = vpack.c.b16 %v196, %v195
  %v227 = vpack.c.b16 %v198, %v197
  %v228 = vpack.c.b16 %v200, %v199
  %v229 = vpack.c.b16 %v202, %v201
  %v230 = vpack.c.b16 %v204, %v203
  %v231 = vpack.c.b16 %v206, %v205
  %vm257 = vcmask 130048
  %v259 = vsel %vm257, %v103, 0
  %261 = vmatprep.subr.bf16.mxu0 0
  %262 = vmatpush1.bf16.msra.mxu0 %v207
  %263 = vmatprep.subr.bf16.mxu0 0
  %264 = vmatpush1.bf16.msra.mxu0 %v208
  %265 = vmatprep.subr.bf16.mxu0 0
  %266 = vmatpush1.bf16.msra.mxu0 %v209
  %267 = vmatprep.subr.bf16.mxu0 0
  %268 = vmatpush1.bf16.msra.mxu0 %v210
  %269 = vmatprep.subr.bf16.mxu0 0
  %270 = vmatpush1.bf16.msra.mxu0 %v211
  %271 = vmatprep.subr.bf16.mxu0 0
  %272 = vmatpush1.bf16.msra.mxu0 %v212
  %273 = vmatprep.subr.bf16.mxu0 0
  %274 = vmatpush1.bf16.msra.mxu0 %v213
  %275 = vmatprep.subr.bf16.mxu0 0
  %276 = vmatpush1.bf16.msra.mxu0 %v214
  %277 = vmatprep.subr.bf16.mxu0 0
  %278 = vmatpush1.bf16.msra.mxu0 %v215
  %279 = vmatprep.subr.bf16.mxu0 0
  %280 = vmatpush1.bf16.msra.mxu0 %v216
  %281 = vmatprep.subr.bf16.mxu0 0
  %282 = vmatpush1.bf16.msra.mxu0 %v217
  %283 = vmatprep.subr.bf16.mxu0 0
  %284 = vmatpush1.bf16.msra.mxu0 %v218
  %285 = vmatprep.subr.bf16.mxu0 0
  %286 = vmatpush1.bf16.msra.mxu0 %v219
  %287 = vmatprep.subr.bf16.mxu0 0
  %288 = vmatpush1.bf16.msra.mxu0 %v220
  %289 = vmatprep.subr.bf16.mxu0 0
  %290 = vmatpush1.bf16.msra.mxu0 %v221
  %291 = vmatprep.subr.bf16.mxu0 0
  %292 = vmatpush1.bf16.msra.mxu0 %v222
  %293 = vmatprep.mubr.bf16.mxu0 %v101
  %294 = vmatmul.mubr.bf16.gmra.mrb[0].mxu0 %v100
  %v295 = vpop.f32.mrb[0].mxu0
  %v296 = vadd.f32 %v86, %v295
  %v297 = vpop.f32.mrb[0].mxu0
  %v298 = vpop.f32.mrb[0].mxu0
  %v299 = vadd.f32 %v86, %v298
  %v300 = vpop.f32.mrb[0].mxu0
  %301 = vdwg.mxu0
  %302 = vmatprep.subr.bf16.mxu0 0
  %303 = vmatpush1.bf16.msra.mxu0 %v223
  %304 = vmatprep.subr.bf16.mxu0 0
  %305 = vmatpush1.bf16.msra.mxu0 %v224
  %306 = vmatprep.subr.bf16.mxu0 0
  %307 = vmatpush1.bf16.msra.mxu0 %v225
  %308 = vmatprep.subr.bf16.mxu0 0
  %309 = vmatpush1.bf16.msra.mxu0 %v226
  %310 = vmatprep.subr.bf16.mxu0 0
  %311 = vmatpush1.bf16.msra.mxu0 %v227
  %312 = vmatprep.subr.bf16.mxu0 0
  %313 = vmatpush1.bf16.msra.mxu0 %v228
  %314 = vmatprep.subr.bf16.mxu0 0
  %315 = vmatpush1.bf16.msra.mxu0 %v229
  %316 = vmatprep.subr.bf16.mxu0 0
  %317 = vmatpush1.bf16.msra.mxu0 %v230
  %318 = vmatprep.subr.bf16.mxu0 0
  %319 = vmatpush1.bf16.msra.mxu0 %v231
  %320 = vmatprep.subr.bf16.mxu0 0
  %321 = vmatpush1.bf16.msra.mxu0 0
  %322 = vmatprep.subr.bf16.mxu0 0
  %323 = vmatpush1.bf16.msra.mxu0 0
  %324 = vmatprep.subr.bf16.mxu0 0
  %325 = vmatpush1.bf16.msra.mxu0 0
  %326 = vmatprep.subr.bf16.mxu0 0
  %327 = vmatpush1.bf16.msra.mxu0 0
  %328 = vmatprep.subr.bf16.mxu0 0
  %329 = vmatpush1.bf16.msra.mxu0 0
  %330 = vmatprep.subr.bf16.mxu0 0
  %331 = vmatpush1.bf16.msra.mxu0 0
  %332 = vmatprep.subr.bf16.mxu0 0
  %333 = vmatpush1.bf16.msra.mxu0 0
  %334 = vmatprep.mubr.bf16.mxu0 %v259
  %335 = vmatmul.mubr.bf16.gmra.mrb[0].mxu0 %v102
  %v336 = vpop.f32.mrb[0].mxu0
  %v337 = vadd.f32 %v296, %v336
  %v338 = vpop.f32.mrb[0].mxu0
  %v339 = vpop.f32.mrb[0].mxu0
  %v340 = vadd.f32 %v299, %v339
  %v341 = vpop.f32.mrb[0].mxu0
  %342 = vdwg.mxu0
  %v343 = vmax.f32 %v337, 0.0
  %v344 = vmax.f32 %v340, 0.0
  %v345 = vpack.c.bf16 %v344, %v343
  %v346 = vld [vmem:[%s3] sm:$0xf]
  %v347 = vld [vmem:[%s3 + $0x4] sm:$0xf]
  %v348 = vld [vmem:[%s3 + $0x8] sm:$0xf]
  %v349 = vld [vmem:[%s3 + $0xc] sm:$0xf]
  %v350 = vld [vmem:[%s3 + $0x10] sm:$0xf]
  %v351 = vld [vmem:[%s3 + $0x14] sm:$0xf]
  %v352 = vld [vmem:[%s3 + $0x18] sm:$0xf]
  %v353 = vld [vmem:[%s3 + $0x1c] sm:$0xf]
  %v354 = vld [vmem:[%s3 + $0x20] sm:$0xf]
  %v355 = vld [vmem:[%s3 + $0x24] sm:$0xf]
  %v356 = vld [vmem:[%s3 + $0x28] sm:$0xf]
  %v357 = vld [vmem:[%s3 + $0x2c] sm:$0xf]
  %v358 = vld [vmem:[%s3 + $0x30] sm:$0xf]
  %v359 = vld [vmem:[%s3 + $0x34] sm:$0xf]
  %v360 = vld [vmem:[%s3 + $0x38] sm:$0xf]
  %v361 = vld [vmem:[%s3 + $0x3c] sm:$0xf]
  %v362 = vld [vmem:[%s4] sm:$0x1]
  %v364 = vlaneseq
  %v365 = vshrl.u32 %v364, 7
  %v366 = vsub.s32 0, %v365
  %v367 = vrot.slane %v362, %v366
  %v385 = vunpack.c.l.b16 %v346
  %v386 = vunpack.c.l.b16 %v347
  %v387 = vunpack.c.l.b16 %v348
  %v388 = vunpack.c.l.b16 %v349
  %v389 = vunpack.c.l.b16 %v350
  %v390 = vunpack.c.l.b16 %v351
  %v391 = vunpack.c.l.b16 %v352
  %v392 = vunpack.c.l.b16 %v353
  %v393 = vunpack.c.l.b16 %v354
  %v394 = vunpack.c.l.b16 %v355
  %v395 = vunpack.c.l.b16 %v356
  %v396 = vunpack.c.l.b16 %v357
  %v397 = vunpack.c.l.b16 %v358
  %v398 = vunpack.c.l.b16 %v359
  %v399 = vunpack.c.l.b16 %v360
  %v400 = vunpack.c.l.b16 %v361
  %v401 = vpack.c.b16 %v386, %v385
  %v402 = vpack.c.b16 %v388, %v387
  %v403 = vpack.c.b16 %v390, %v389
  %v404 = vpack.c.b16 %v392, %v391
  %v405 = vpack.c.b16 %v394, %v393
  %v406 = vpack.c.b16 %v396, %v395
  %v407 = vpack.c.b16 %v398, %v397
  %v408 = vpack.c.b16 %v400, %v399
  %417 = vmatprep.subr.bf16.mxu0 0
  %418 = vmatpush1.bf16.msra.mxu0 %v401
  %419 = vmatprep.subr.bf16.mxu0 0
  %420 = vmatpush1.bf16.msra.mxu0 %v402
  %421 = vmatprep.subr.bf16.mxu0 0
  %422 = vmatpush1.bf16.msra.mxu0 %v403
  %423 = vmatprep.subr.bf16.mxu0 0
  %424 = vmatpush1.bf16.msra.mxu0 %v404
  %425 = vmatprep.subr.bf16.mxu0 0
  %426 = vmatpush1.bf16.msra.mxu0 %v405
  %427 = vmatprep.subr.bf16.mxu0 0
  %428 = vmatpush1.bf16.msra.mxu0 %v406
  %429 = vmatprep.subr.bf16.mxu0 0
  %430 = vmatpush1.bf16.msra.mxu0 %v407
  %431 = vmatprep.subr.bf16.mxu0 0
  %432 = vmatpush1.bf16.msra.mxu0 %v408
  %433 = vmatprep.subr.bf16.mxu0 0
  %434 = vmatpush1.bf16.msra.mxu0 0
  %435 = vmatprep.subr.bf16.mxu0 0
  %436 = vmatpush1.bf16.msra.mxu0 0
  %437 = vmatprep.subr.bf16.mxu0 0
  %438 = vmatpush1.bf16.msra.mxu0 0
  %439 = vmatprep.subr.bf16.mxu0 0
  %440 = vmatpush1.bf16.msra.mxu0 0
  %441 = vmatprep.subr.bf16.mxu0 0
  %442 = vmatpush1.bf16.msra.mxu0 0
  %443 = vmatprep.subr.bf16.mxu0 0
  %444 = vmatpush1.bf16.msra.mxu0 0
  %445 = vmatprep.subr.bf16.mxu0 0
  %446 = vmatpush1.bf16.msra.mxu0 0
  %447 = vmatprep.subr.bf16.mxu0 0
  %448 = vmatpush1.bf16.msra.mxu0 0
  %449 = vmatprep.mubr.bf16.mxu0 0
  %450 = vmatmul.mubr.bf16.gmra.mrb[0].mxu0 %v345
  %v451 = vpop.f32.mrb[0].mxu0
  %v452 = vadd.f32 %v367, %v451
  %v453 = vpop.f32.mrb[0].mxu0
  %v454 = vpop.f32.mrb[0].mxu0
  %v455 = vadd.f32 %v367, %v454
  %v456 = vpop.f32.mrb[0].mxu0
  %457 = vdwg.mxu0
  %v458 = vmax.f32 %v452, 0.0
  %v459 = vmax.f32 %v455, 0.0
  %v460 = vpack.c.bf16 %v459, %v458
  %v461 = vld [vmem:[%s5] sm:$0xf]
  %v462 = vld [vmem:[%s5 + $0x4] sm:$0xf]
  %v463 = vld [vmem:[%s5 + $0x8] sm:$0xf]
  %v464 = vld [vmem:[%s5 + $0xc] sm:$0xf]
  %v465 = vld [vmem:[%s5 + $0x10] sm:$0xf]
  %v466 = vld [vmem:[%s5 + $0x14] sm:$0xf]
  %v467 = vld [vmem:[%s5 + $0x18] sm:$0xf]
  %v468 = vld [vmem:[%s5 + $0x1c] sm:$0xf]
  %v469 = vld [vmem:[%s5 + $0x20] sm:$0xf]
  %v470 = vld [vmem:[%s5 + $0x24] sm:$0xf]
  %v471 = vld [vmem:[%s5 + $0x28] sm:$0xf]
  %v472 = vld [vmem:[%s5 + $0x2c] sm:$0xf]
  %v473 = vld [vmem:[%s5 + $0x30] sm:$0xf]
  %v474 = vld [vmem:[%s5 + $0x34] sm:$0xf]
  %v475 = vld [vmem:[%s5 + $0x38] sm:$0xf]
  %v476 = vld [vmem:[%s5 + $0x3c] sm:$0xf]
  %v477 = vld [vmem:[%s6] sm:$0x1]
  %v479 = vlaneseq
  %v480 = vshrl.u32 %v479, 7
  %v481 = vsub.s32 0, %v480
  %v482 = vrot.slane %v477, %v481
  %v500 = vunpack.c.l.b16 %v461
  %v501 = vunpack.c.l.b16 %v462
  %v502 = vunpack.c.l.b16 %v463
  %v503 = vunpack.c.l.b16 %v464
  %v504 = vunpack.c.l.b16 %v465
  %v505 = vunpack.c.l.b16 %v466
  %v506 = vunpack.c.l.b16 %v467
  %v507 = vunpack.c.l.b16 %v468
  %v508 = vunpack.c.l.b16 %v469
  %v509 = vunpack.c.l.b16 %v470
  %v510 = vunpack.c.l.b16 %v471
  %v511 = vunpack.c.l.b16 %v472
  %v512 = vunpack.c.l.b16 %v473
  %v513 = vunpack.c.l.b16 %v474
  %v514 = vunpack.c.l.b16 %v475
  %v515 = vunpack.c.l.b16 %v476
  %v516 = vpack.c.b16 %v501, %v500
  %v517 = vpack.c.b16 %v503, %v502
  %v518 = vpack.c.b16 %v505, %v504
  %v519 = vpack.c.b16 %v507, %v506
  %v520 = vpack.c.b16 %v509, %v508
  %v521 = vpack.c.b16 %v511, %v510
  %v522 = vpack.c.b16 %v513, %v512
  %v523 = vpack.c.b16 %v515, %v514
  %532 = vmatprep.subr.bf16.mxu0 0
  %533 = vmatpush1.bf16.msra.mxu0 %v516
  %534 = vmatprep.subr.bf16.mxu0 0
  %535 = vmatpush1.bf16.msra.mxu0 %v517
  %536 = vmatprep.subr.bf16.mxu0 0
  %537 = vmatpush1.bf16.msra.mxu0 %v518
  %538 = vmatprep.subr.bf16.mxu0 0
  %539 = vmatpush1.bf16.msra.mxu0 %v519
  %540 = vmatprep.subr.bf16.mxu0 0
  %541 = vmatpush1.bf16.msra.mxu0 %v520
  %542 = vmatprep.subr.bf16.mxu0 0
  %543 = vmatpush1.bf16.msra.mxu0 %v521
  %544 = vmatprep.subr.bf16.mxu0 0
  %545 = vmatpush1.bf16.msra.mxu0 %v522
  %546 = vmatprep.subr.bf16.mxu0 0
  %547 = vmatpush1.bf16.msra.mxu0 %v523
  %548 = vmatprep.subr.bf16.mxu0 0
  %549 = vmatpush1.bf16.msra.mxu0 0
  %550 = vmatprep.subr.bf16.mxu0 0
  %551 = vmatpush1.bf16.msra.mxu0 0
  %552 = vmatprep.subr.bf16.mxu0 0
  %553 = vmatpush1.bf16.msra.mxu0 0
  %554 = vmatprep.subr.bf16.mxu0 0
  %555 = vmatpush1.bf16.msra.mxu0 0
  %556 = vmatprep.subr.bf16.mxu0 0
  %557 = vmatpush1.bf16.msra.mxu0 0
  %558 = vmatprep.subr.bf16.mxu0 0
  %559 = vmatpush1.bf16.msra.mxu0 0
  %560 = vmatprep.subr.bf16.mxu0 0
  %561 = vmatpush1.bf16.msra.mxu0 0
  %562 = vmatprep.subr.bf16.mxu0 0
  %563 = vmatpush1.bf16.msra.mxu0 0
  %564 = vmatprep.mubr.bf16.mxu0 0
  %565 = vmatmul.mubr.bf16.gmra.mrb[0].mxu0 %v460
  %v566 = vpop.f32.mrb[0].mxu0
  %v567 = vadd.f32 %v482, %v566
  %v568 = vpop.f32.mrb[0].mxu0
  %v569 = vpop.f32.mrb[0].mxu0
  %v570 = vadd.f32 %v482, %v569
  %v571 = vpop.f32.mrb[0].mxu0
  %572 = vdwg.mxu0
  %573 = vst [vmem:[%s7] sm:$0xff] %v567
  %574 = vst [vmem:[%s7 + $0x8] sm:$0xff] %v570
  // Predicated region
  $region30: #{lenet_forward.5} parent=0 // pred_check
    _
  $region31: #{lenet_forward.5} parent=0 // pred_check_branch
    %576 = sbr.rel (0) target = $region33
  $region32: #{lenet_forward.5} parent=0 // pred_region
    _
  $region33: #{lenet_forward.5} parent=0 // pred_fallthru
    _
  // Predicated region
  $region34: #{lenet_forward.5} parent=0 // pred_check
    _
  $region35: #{lenet_forward.5} parent=0 // pred_check_branch
    %578 = sbr.rel (0) target = $region37
  $region36: #{lenet_forward.5} parent=0 // pred_region
    _
  $region37: #{lenet_forward.5} parent=0 // pred_fallthru
    _

</llo_original>
